<compile_context>
chip_gen: v5e
topology: v5e:2x2
jax: 0.10.0
libtpu: 0.0.40
codegen_flags: <defaults>
</compile_context>

<pallas_src>
import math

import jax
import jax.numpy as jnp
from jax.experimental import pallas as pl
from jax.experimental.pallas import tpu as pltpu


def _round_up(x, m):
    return ((x + m - 1) // m) * m


def _one_step_decoder_kernel(ids_ref, h0_ref, c0_ref, emb_ref, fcw_ref, fcb_ref, *refs):
    """Fused single-step decoder, grid = (num vocab tiles,).

    refs = (w_ih_t_0, w_hh_t_0, bias_0, ..., w_ih_t_{L-1}, w_hh_t_{L-1}, bias_{L-1},
            logits_ref, h_out_ref, c_out_ref,            # outputs
            x_emb_ref, x_fc_ref, dma_sem)                # scratch
    """
    n_layers, b_pad, h_pad = h0_ref.shape
    layer_refs = refs[:3 * n_layers]
    (logits_ref, h_out_ref, c_out_ref,
     x_emb_ref, x_fc_ref, dma_sem) = refs[3 * n_layers:]

    # ---- Prologue: embedding DMA-gather + all LSTM layers, only at the first vocab tile. ----
    @pl.when(pl.program_id(0) == 0)
    def _prologue():
        # Row gather: B_pad tiny DMAs driven by SMEM-resident token ids.
        copies = []
        for b in range(b_pad):
            cp = pltpu.make_async_copy(
                emb_ref.at[pl.ds(ids_ref[b], 1)],    # (1, E_pad) row in HBM
                x_emb_ref.at[pl.ds(b, 1)],           # (1, E_pad) row in VMEM scratch
                dma_sem.at[b])
            cp.start()
            copies.append(cp)
        for cp in copies:
            cp.wait()

        # Dropout (eval mode) == identity.
        # TODO(synk): training-mode dropout (RNG mask) not implemented.
        x = x_emb_ref[...]                           # (B_pad, E_pad)

        # Stacked LSTM cells, one timestep each (PyTorch gate order i, f, g, o).
        # Gate blocks are laid out at lane-aligned offsets of width h_pad (multiple of 128).
        for l in range(n_layers):
            w_ih_t = layer_refs[3 * l][...]          # (D_in_pad, 4*H_pad)
            w_hh_t = layer_refs[3 * l + 1][...]      # (H_pad,   4*H_pad)
            bias = layer_refs[3 * l + 2][...]        # (1,       4*H_pad)  = b_ih + b_hh
            h = h0_ref[l]                            # (B_pad, H_pad)
            c = c0_ref[l]                            # (B_pad, H_pad)

            gates = (jnp.dot(x, w_ih_t, preferred_element_type=jnp.float32)
                     + jnp.dot(h, w_hh_t, preferred_element_type=jnp.float32)
                     + bias)                         # (B_pad, 4*H_pad)

            i_g = jax.nn.sigmoid(gates[:, 0 * h_pad:1 * h_pad])
            f_g = jax.nn.sigmoid(gates[:, 1 * h_pad:2 * h_pad])
            g_g = jnp.tanh(gates[:, 2 * h_pad:3 * h_pad])
            o_g = jax.nn.sigmoid(gates[:, 3 * h_pad:4 * h_pad])

            c_new = f_g * c + i_g * g_g
            h_new = o_g * jnp.tanh(c_new)

            h_out_ref[l] = h_new                     # resident output block, written once
            c_out_ref[l] = c_new
            x = h_new                                # inter-layer dropout: eval identity

        x_fc_ref[...] = x                            # carried across vocab tiles

    # ---- Per-tile fc projection (weight tile is pipelined / double-buffered). ----
    logits_ref[...] = (jnp.dot(x_fc_ref[...], fcw_ref[...],
                               preferred_element_type=jnp.float32)
                       + fcb_ref[...])


def one_step_decoder_forward(prepped, target_token, hidden_pad, cell_pad):
    """One decode step in padded layout.

    target_token : (B,) int                     hidden_pad/cell_pad : (n_layers, B_pad, H_pad)
    Returns (logits_pad (B_pad, V_pad), hidden_pad', cell_pad') — state stays padded so it can
    be fed straight back into the next step (aliased in place).
    """
    emb_p = prepped["embedding"]          # (V, E_pad)       HBM resident
    fcw_p = prepped["fc_w_t"]             # (H_pad, V_pad)
    fcb_p = prepped["fc_b"]               # (1, V_pad)
    layers = prepped["lstm"]

    n_layers, B_pad, H_pad = hidden_pad.shape
    E_pad = emb_p.shape[1]
    V_pad = fcw_p.shape[1]
    TILE_V = math.gcd(V_pad, 512)         # multiple of 128, divides V_pad, <= 512
    n_tiles = V_pad // TILE_V

    B = target_token.shape[0]
    ids_p = jnp.pad(target_token.astype(jnp.int32), (0, B_pad - B))

    def _const(shape):
        nd = len(shape)
        return pl.BlockSpec(shape, lambda j, ids, _n=nd: (0,) * _n)

    in_specs = [
        _const((n_layers, B_pad, H_pad)),                         # hidden
        _const((n_layers, B_pad, H_pad)),                         # cell
        pl.BlockSpec(memory_space=pl.ANY),                        # embedding table (HBM)
        pl.BlockSpec((H_pad, TILE_V), lambda j, ids: (0, j)),     # fc weight tile
        pl.BlockSpec((1, TILE_V), lambda j, ids: (0, j)),         # fc bias tile
    ]
    layer_args = []
    for lp in layers:
        layer_args += [lp["w_ih_t"], lp["w_hh_t"], lp["bias"]]
        in_specs += [_const(lp["w_ih_t"].shape),
                     _const(lp["w_hh_t"].shape),
                     _const(lp["bias"].shape)]

    out_shapes = (
        jax.ShapeDtypeStruct((B_pad, V_pad), jnp.float32),
        jax.ShapeDtypeStruct((n_layers, B_pad, H_pad), jnp.float32),
        jax.ShapeDtypeStruct((n_layers, B_pad, H_pad), jnp.float32),
    )
    out_specs = (
        pl.BlockSpec((B_pad, TILE_V), lambda j, ids: (0, j)),     # logits tile
        _const((n_layers, B_pad, H_pad)),                         # new hidden
        _const((n_layers, B_pad, H_pad)),                         # new cell
    )

    grid_spec = pltpu.PrefetchScalarGridSpec(
        num_scalar_prefetch=1,
        grid=(n_tiles,),
        in_specs=in_specs,
        out_specs=out_specs,
        scratch_shapes=[
            pltpu.VMEM((B_pad, E_pad), jnp.float32),   # gathered embeddings
            pltpu.VMEM((B_pad, H_pad), jnp.float32),   # last-layer h, carried across tiles
            pltpu.SemaphoreType.DMA((B_pad,)),
        ],
    )

    logits_p, h_new_p, c_new_p = pl.pallas_call(
        _one_step_decoder_kernel,
        grid_spec=grid_spec,
        out_shape=out_shapes,
        # args: ids=0, hidden=1, cell=2, emb=3, fcw=4, fcb=5, ...  -> update state in place.
        input_output_aliases={1: 1, 2: 2},
        compiler_params=pltpu.CompilerParams(
            dimension_semantics=("arbitrary",),
            vmem_limit_bytes=48 * 1024 * 1024),
    )(ids_p, hidden_pad, cell_pad, emb_p, fcw_p, fcb_p, *layer_args)

    return logits_p, h_new_p, c_new_p


def init_decoder_params(key, vocab_len, embedding_dim, hidden_dim, n_layers):
    """Deterministic synthetic parameters with PyTorch-matching shapes/layout."""
    raw = {}
    key, k_emb = jax.random.split(key)
    raw["embedding"] = (
        jax.random.normal(k_emb, (vocab_len, embedding_dim), jnp.float32) * 0.1)

    scale = 1.0 / float(hidden_dim) ** 0.5
    layers = []
    for layer in range(n_layers):
        d_in = embedding_dim if layer == 0 else hidden_dim
        key, k1, k2, k3, k4 = jax.random.split(key, 5)
        layers.append({
            "w_ih": jax.random.uniform(k1, (4 * hidden_dim, d_in), jnp.float32, -scale, scale),
            "w_hh": jax.random.uniform(k2, (4 * hidden_dim, hidden_dim), jnp.float32, -scale, scale),
            "b_ih": jax.random.uniform(k3, (4 * hidden_dim,), jnp.float32, -scale, scale),
            "b_hh": jax.random.uniform(k4, (4 * hidden_dim,), jnp.float32, -scale, scale),
        })
    raw["lstm"] = layers

    key, kf1, kf2 = jax.random.split(key, 3)
    raw["fc_w"] = jax.random.uniform(kf1, (vocab_len, hidden_dim), jnp.float32, -scale, scale)
    raw["fc_b"] = jax.random.uniform(kf2, (vocab_len,), jnp.float32, -scale, scale)
    return raw


def prepare_decoder_params(raw, *, lane=128):
    """One-time layout prep: transpose + pad to lane-dense, gate-aligned TPU layout."""
    V, E = raw["embedding"].shape
    H = raw["lstm"][0]["w_hh"].shape[1]
    E_pad = _round_up(E, lane)
    H_pad = _round_up(H, lane)
    V_pad = _round_up(V, lane)

    def pad_gate_cols(w_t, d_in, d_in_pad):
        # (d_in, 4H) -> (d_in_pad, 4*H_pad), each gate block padded to a lane-aligned slot.
        parts = []
        for g in range(4):
            blk = w_t[:, g * H:(g + 1) * H]
            parts.append(jnp.pad(blk, ((0, d_in_pad - d_in), (0, H_pad - H))))
        return jnp.concatenate(parts, axis=1)

    def pad_gate_bias(b):
        parts = [jnp.pad(b[g * H:(g + 1) * H], (0, H_pad - H)) for g in range(4)]
        return jnp.concatenate(parts).reshape(1, 4 * H_pad)

    prepped = {"embedding": jnp.pad(raw["embedding"], ((0, 0), (0, E_pad - E)))}
    layers = []
    for l, lp in enumerate(raw["lstm"]):
        d_in = E if l == 0 else H
        d_in_pad = E_pad if l == 0 else H_pad
        layers.append({
            "w_ih_t": pad_gate_cols(lp["w_ih"].T, d_in, d_in_pad),   # (d_in_pad, 4*H_pad)
            "w_hh_t": pad_gate_cols(lp["w_hh"].T, H, H_pad),         # (H_pad,   4*H_pad)
            "bias": pad_gate_bias(lp["b_ih"] + lp["b_hh"]),          # (1,       4*H_pad)
        })
    prepped["lstm"] = layers
    prepped["fc_w_t"] = jnp.pad(raw["fc_w"].T, ((0, H_pad - H), (0, V_pad - V)))
    prepped["fc_b"] = jnp.pad(raw["fc_b"], (0, V_pad - V)).reshape(1, V_pad)
    return prepped


def one_step_decoder_reference(raw, target_token, hidden, cell):
    """Pure-JAX reference of the same forward (for validation)."""
    x = jnp.take(raw["embedding"], target_token, axis=0)     # (B, E)
    H = hidden.shape[-1]
    hs, cs = [], []
    for l, lp in enumerate(raw["lstm"]):
        gates = x @ lp["w_ih"].T + hidden[l] @ lp["w_hh"].T + lp["b_ih"] + lp["b_hh"]
        i_g = jax.nn.sigmoid(gates[:, 0 * H:1 * H])
        f_g = jax.nn.sigmoid(gates[:, 1 * H:2 * H])
        g_g = jnp.tanh(gates[:, 2 * H:3 * H])
        o_g = jax.nn.sigmoid(gates[:, 3 * H:4 * H])
        c_new = f_g * cell[l] + i_g * g_g
        h_new = o_g * jnp.tanh(c_new)
        hs.append(h_new)
        cs.append(c_new)
        x = h_new
    logits = x @ raw["fc_w"].T + raw["fc_b"]
    return logits, jnp.stack(hs, 0), jnp.stack(cs, 0)


if __name__ == "__main__":
    vocab_len = 300          # -> V_pad = 384 -> 3 vocab tiles of 128 (exercises the fc tiling)
    embedding_dim = 32
    hidden_dim = 32
    n_layers = 2
    batch = 2

    key = jax.random.PRNGKey(0)
    key, k_tok, k_h, k_c = jax.random.split(key, 4)
    target_token = jax.random.randint(k_tok, (batch,), 0, vocab_len, dtype=jnp.int32)
    hidden = jax.random.normal(k_h, (n_layers, batch, hidden_dim), jnp.float32) * 0.1
    cell = jax.random.normal(k_c, (n_layers, batch, hidden_dim), jnp.float32) * 0.1

    raw = init_decoder_params(key, vocab_len, embedding_dim, hidden_dim, n_layers)
    prepped = prepare_decoder_params(raw)

    # Pad the state ONCE; it stays padded (and is updated in place) across decode steps.
    B_pad = _round_up(batch, 8)
    H_pad = _round_up(hidden_dim, 128)
    hidden_pad = jnp.pad(hidden, ((0, 0), (0, B_pad - batch), (0, H_pad - hidden_dim)))
    cell_pad = jnp.pad(cell, ((0, 0), (0, B_pad - batch), (0, H_pad - hidden_dim)))

    fwd = jax.jit(one_step_decoder_forward)

    # ---- decode step 1 ----
    logits1_p, h1_p, c1_p = fwd(prepped, target_token, hidden_pad, cell_pad)
    jax.block_until_ready((logits1_p, h1_p, c1_p))
    logits1 = logits1_p[:batch, :vocab_len]
    h1 = h1_p[:, :batch, :hidden_dim]
    c1 = c1_p[:, :batch, :hidden_dim]

    assert logits1.shape == (batch, vocab_len)
    assert h1.shape == (n_layers, batch, hidden_dim)
    assert c1.shape == (n_layers, batch, hidden_dim)
    assert logits1.dtype == jnp.float32

    ref_logits1, ref_h1, ref_c1 = one_step_decoder_reference(raw, target_token, hidden, cell)
    assert bool(jnp.all(jnp.isfinite(logits1)))
    assert bool(jnp.allclose(logits1, ref_logits1, rtol=2e-2, atol=2e-2))
    assert bool(jnp.allclose(h1, ref_h1, rtol=2e-2, atol=2e-2))
    assert bool(jnp.allclose(c1, ref_c1, rtol=2e-2, atol=2e-2))

    # Padded hidden/cell columns must stay (numerically) zero so the state can be carried.
    assert bool(jnp.all(jnp.abs(h1_p[:, :, hidden_dim:]) <= 1e-6))
    assert bool(jnp.all(jnp.abs(c1_p[:, :, hidden_dim:]) <= 1e-6))

    # ---- decode step 2: feed the padded state straight back in (no re-pad / re-slice). ----
    next_token = jnp.argmax(ref_logits1, axis=-1).astype(jnp.int32)
    logits2_p, h2_p, c2_p = fwd(prepped, next_token, h1_p, c1_p)
    jax.block_until_ready((logits2_p, h2_p, c2_p))
    logits2 = logits2_p[:batch, :vocab_len]
    h2 = h2_p[:, :batch, :hidden_dim]
    c2 = c2_p[:, :batch, :hidden_dim]

    ref_logits2, ref_h2, ref_c2 = one_step_decoder_reference(raw, next_token, ref_h1, ref_c1)
    assert bool(jnp.allclose(logits2, ref_logits2, rtol=2e-2, atol=2e-2))
    assert bool(jnp.allclose(h2, ref_h2, rtol=2e-2, atol=2e-2))
    assert bool(jnp.allclose(c2, ref_c2, rtol=2e-2, atol=2e-2))

    print("KERNEL_OK")
</pallas_src>

<mosaic_0001>
module attributes {stable_mosaic.version = 11 : i64} {
  func.func @_one_step_decoder_kernel(%arg0: i32, %arg1: memref<8xi32, #tpu.memory_space<smem>>, %arg2: memref<2x8x128xf32, #tpu.memory_space<vmem>>, %arg3: memref<2x8x128xf32, #tpu.memory_space<vmem>>, %arg4: memref<300x128xf32, #tpu.memory_space<any>>, %arg5: memref<128x128xf32, #tpu.memory_space<vmem>>, %arg6: memref<1x128xf32, #tpu.memory_space<vmem>>, %arg7: memref<128x512xf32, #tpu.memory_space<vmem>>, %arg8: memref<128x512xf32, #tpu.memory_space<vmem>>, %arg9: memref<1x512xf32, #tpu.memory_space<vmem>>, %arg10: memref<128x512xf32, #tpu.memory_space<vmem>>, %arg11: memref<128x512xf32, #tpu.memory_space<vmem>>, %arg12: memref<1x512xf32, #tpu.memory_space<vmem>>, %arg13: memref<8x128xf32, #tpu.memory_space<vmem>>, %arg14: memref<2x8x128xf32, #tpu.memory_space<vmem>>, %arg15: memref<2x8x128xf32, #tpu.memory_space<vmem>>, %arg16: memref<8x128xf32, #tpu.memory_space<vmem>>, %arg17: memref<8x128xf32, #tpu.memory_space<vmem>>, %arg18: memref<8x!tpu.dma_semaphore, #tpu.memory_space<semaphore_mem>>) attributes {dimension_semantics = [#tpu.dimension_semantics<arbitrary>], iteration_bounds = array<i64: 3>, scalar_prefetch = 1 : i64, scratch_operands = 3 : i64, tpu.core_type = #tpu.core_type<tc>, window_params = [{pipeline_mode = #tpu.pipeline_mode<synchronous>, transform_indices = @transform_0, window_bounds = array<i64: 2, 8, 128>}, {pipeline_mode = #tpu.pipeline_mode<synchronous>, transform_indices = @transform_1, window_bounds = array<i64: 2, 8, 128>}, {}, {transform_indices = @transform_3, window_bounds = array<i64: 128, 128>}, {transform_indices = @transform_4, window_bounds = array<i64: 1, 128>}, {pipeline_mode = #tpu.pipeline_mode<synchronous>, transform_indices = @transform_5, window_bounds = array<i64: 128, 512>}, {pipeline_mode = #tpu.pipeline_mode<synchronous>, transform_indices = @transform_6, window_bounds = array<i64: 128, 512>}, {pipeline_mode = #tpu.pipeline_mode<synchronous>, transform_indices = @transform_7, window_bounds = array<i64: 1, 512>}, {pipeline_mode = #tpu.pipeline_mode<synchronous>, transform_indices = @transform_8, window_bounds = array<i64: 128, 512>}, {pipeline_mode = #tpu.pipeline_mode<synchronous>, transform_indices = @transform_9, window_bounds = array<i64: 128, 512>}, {pipeline_mode = #tpu.pipeline_mode<synchronous>, transform_indices = @transform_10, window_bounds = array<i64: 1, 512>}, {transform_indices = @transform_11, window_bounds = array<i64: 8, 128>}, {pipeline_mode = #tpu.pipeline_mode<synchronous>, transform_indices = @transform_12, window_bounds = array<i64: 2, 8, 128>}, {pipeline_mode = #tpu.pipeline_mode<synchronous>, transform_indices = @transform_13, window_bounds = array<i64: 2, 8, 128>}]} {
    %c0_i32 = arith.constant 0 : i32
    %0 = arith.cmpi eq, %arg0, %c0_i32 : i32
    %1 = arith.extui %0 : i1 to i32
    %c0_i32_0 = arith.constant 0 : i32
    %2 = arith.cmpi ne, %1, %c0_i32_0 : i32
    scf.if %2 {
      %c0_8 = arith.constant 0 : index
      %10 = memref.load %arg1[%c0_8] : memref<8xi32, #tpu.memory_space<smem>>
      %c0_i32_9 = arith.constant 0 : i32
      %c0_i32_10 = arith.constant 0 : i32
      %11 = tpu.memref_slice %arg4[%10, %c0_i32_10] : memref<300x128xf32, #tpu.memory_space<any>> -> memref<1x128xf32, #tpu.memory_space<any>>
      %c0_i32_11 = arith.constant 0 : i32
      %c0_i32_12 = arith.constant 0 : i32
      %12 = tpu.memref_slice %arg16[%c0_i32_11, %c0_i32_12] : memref<8x128xf32, #tpu.memory_space<vmem>> -> memref<1x128xf32, #tpu.memory_space<vmem>>
      %13 = tpu.memref_slice %arg18[%c0_i32_9] : memref<8x!tpu.dma_semaphore, #tpu.memory_space<semaphore_mem>> -> memref<1x!tpu.dma_semaphore, #tpu.memory_space<semaphore_mem>>
      %14 = tpu.memref_squeeze %13 : memref<1x!tpu.dma_semaphore, #tpu.memory_space<semaphore_mem>> -> memref<!tpu.dma_semaphore, #tpu.memory_space<semaphore_mem>>
      tpu.enqueue_dma source(%11 : memref<1x128xf32, #tpu.memory_space<any>>) target(%12 : memref<1x128xf32, #tpu.memory_space<vmem>>) target_semaphore(%14 : memref<!tpu.dma_semaphore, #tpu.memory_space<semaphore_mem>>)
      %c1 = arith.constant 1 : index
      %15 = memref.load %arg1[%c1] : memref<8xi32, #tpu.memory_space<smem>>
      %c1_i32 = arith.constant 1 : i32
      %c0_i32_13 = arith.constant 0 : i32
      %16 = tpu.memref_slice %arg4[%15, %c0_i32_13] : memref<300x128xf32, #tpu.memory_space<any>> -> memref<1x128xf32, #tpu.memory_space<any>>
      %c1_i32_14 = arith.constant 1 : i32
      %c0_i32_15 = arith.constant 0 : i32
      %17 = tpu.memref_slice %arg16[%c1_i32_14, %c0_i32_15] : memref<8x128xf32, #tpu.memory_space<vmem>> -> memref<1x128xf32, #tpu.memory_space<vmem>>
      %18 = tpu.memref_slice %arg18[%c1_i32] : memref<8x!tpu.dma_semaphore, #tpu.memory_space<semaphore_mem>> -> memref<1x!tpu.dma_semaphore, #tpu.memory_space<semaphore_mem>>
      %19 = tpu.memref_squeeze %18 : memref<1x!tpu.dma_semaphore, #tpu.memory_space<semaphore_mem>> -> memref<!tpu.dma_semaphore, #tpu.memory_space<semaphore_mem>>
      tpu.enqueue_dma source(%16 : memref<1x128xf32, #tpu.memory_space<any>>) target(%17 : memref<1x128xf32, #tpu.memory_space<vmem>>) target_semaphore(%19 : memref<!tpu.dma_semaphore, #tpu.memory_space<semaphore_mem>>)
      %c2 = arith.constant 2 : index
      %20 = memref.load %arg1[%c2] : memref<8xi32, #tpu.memory_space<smem>>
      %c2_i32 = arith.constant 2 : i32
      %c0_i32_16 = arith.constant 0 : i32
      %21 = tpu.memref_slice %arg4[%20, %c0_i32_16] : memref<300x128xf32, #tpu.memory_space<any>> -> memref<1x128xf32, #tpu.memory_space<any>>
      %c2_i32_17 = arith.constant 2 : i32
      %c0_i32_18 = arith.constant 0 : i32
      %22 = tpu.memref_slice %arg16[%c2_i32_17, %c0_i32_18] : memref<8x128xf32, #tpu.memory_space<vmem>> -> memref<1x128xf32, #tpu.memory_space<vmem>>
      %23 = tpu.memref_slice %arg18[%c2_i32] : memref<8x!tpu.dma_semaphore, #tpu.memory_space<semaphore_mem>> -> memref<1x!tpu.dma_semaphore, #tpu.memory_space<semaphore_mem>>
      %24 = tpu.memref_squeeze %23 : memref<1x!tpu.dma_semaphore, #tpu.memory_space<semaphore_mem>> -> memref<!tpu.dma_semaphore, #tpu.memory_space<semaphore_mem>>
      tpu.enqueue_dma source(%21 : memref<1x128xf32, #tpu.memory_space<any>>) target(%22 : memref<1x128xf32, #tpu.memory_space<vmem>>) target_semaphore(%24 : memref<!tpu.dma_semaphore, #tpu.memory_space<semaphore_mem>>)
      %c3 = arith.constant 3 : index
      %25 = memref.load %arg1[%c3] : memref<8xi32, #tpu.memory_space<smem>>
      %c3_i32 = arith.constant 3 : i32
      %c0_i32_19 = arith.constant 0 : i32
      %26 = tpu.memref_slice %arg4[%25, %c0_i32_19] : memref<300x128xf32, #tpu.memory_space<any>> -> memref<1x128xf32, #tpu.memory_space<any>>
      %c3_i32_20 = arith.constant 3 : i32
      %c0_i32_21 = arith.constant 0 : i32
      %27 = tpu.memref_slice %arg16[%c3_i32_20, %c0_i32_21] : memref<8x128xf32, #tpu.memory_space<vmem>> -> memref<1x128xf32, #tpu.memory_space<vmem>>
      %28 = tpu.memref_slice %arg18[%c3_i32] : memref<8x!tpu.dma_semaphore, #tpu.memory_space<semaphore_mem>> -> memref<1x!tpu.dma_semaphore, #tpu.memory_space<semaphore_mem>>
      %29 = tpu.memref_squeeze %28 : memref<1x!tpu.dma_semaphore, #tpu.memory_space<semaphore_mem>> -> memref<!tpu.dma_semaphore, #tpu.memory_space<semaphore_mem>>
      tpu.enqueue_dma source(%26 : memref<1x128xf32, #tpu.memory_space<any>>) target(%27 : memref<1x128xf32, #tpu.memory_space<vmem>>) target_semaphore(%29 : memref<!tpu.dma_semaphore, #tpu.memory_space<semaphore_mem>>)
      %c4 = arith.constant 4 : index
      %30 = memref.load %arg1[%c4] : memref<8xi32, #tpu.memory_space<smem>>
      %c4_i32 = arith.constant 4 : i32
      %c0_i32_22 = arith.constant 0 : i32
      %31 = tpu.memref_slice %arg4[%30, %c0_i32_22] : memref<300x128xf32, #tpu.memory_space<any>> -> memref<1x128xf32, #tpu.memory_space<any>>
      %c4_i32_23 = arith.constant 4 : i32
      %c0_i32_24 = arith.constant 0 : i32
      %32 = tpu.memref_slice %arg16[%c4_i32_23, %c0_i32_24] : memref<8x128xf32, #tpu.memory_space<vmem>> -> memref<1x128xf32, #tpu.memory_space<vmem>>
      %33 = tpu.memref_slice %arg18[%c4_i32] : memref<8x!tpu.dma_semaphore, #tpu.memory_space<semaphore_mem>> -> memref<1x!tpu.dma_semaphore, #tpu.memory_space<semaphore_mem>>
      %34 = tpu.memref_squeeze %33 : memref<1x!tpu.dma_semaphore, #tpu.memory_space<semaphore_mem>> -> memref<!tpu.dma_semaphore, #tpu.memory_space<semaphore_mem>>
      tpu.enqueue_dma source(%31 : memref<1x128xf32, #tpu.memory_space<any>>) target(%32 : memref<1x128xf32, #tpu.memory_space<vmem>>) target_semaphore(%34 : memref<!tpu.dma_semaphore, #tpu.memory_space<semaphore_mem>>)
      %c5 = arith.constant 5 : index
      %35 = memref.load %arg1[%c5] : memref<8xi32, #tpu.memory_space<smem>>
      %c5_i32 = arith.constant 5 : i32
      %c0_i32_25 = arith.constant 0 : i32
      %36 = tpu.memref_slice %arg4[%35, %c0_i32_25] : memref<300x128xf32, #tpu.memory_space<any>> -> memref<1x128xf32, #tpu.memory_space<any>>
      %c5_i32_26 = arith.constant 5 : i32
      %c0_i32_27 = arith.constant 0 : i32
      %37 = tpu.memref_slice %arg16[%c5_i32_26, %c0_i32_27] : memref<8x128xf32, #tpu.memory_space<vmem>> -> memref<1x128xf32, #tpu.memory_space<vmem>>
      %38 = tpu.memref_slice %arg18[%c5_i32] : memref<8x!tpu.dma_semaphore, #tpu.memory_space<semaphore_mem>> -> memref<1x!tpu.dma_semaphore, #tpu.memory_space<semaphore_mem>>
      %39 = tpu.memref_squeeze %38 : memref<1x!tpu.dma_semaphore, #tpu.memory_space<semaphore_mem>> -> memref<!tpu.dma_semaphore, #tpu.memory_space<semaphore_mem>>
      tpu.enqueue_dma source(%36 : memref<1x128xf32, #tpu.memory_space<any>>) target(%37 : memref<1x128xf32, #tpu.memory_space<vmem>>) target_semaphore(%39 : memref<!tpu.dma_semaphore, #tpu.memory_space<semaphore_mem>>)
      %c6 = arith.constant 6 : index
      %40 = memref.load %arg1[%c6] : memref<8xi32, #tpu.memory_space<smem>>
      %c6_i32 = arith.constant 6 : i32
      %c0_i32_28 = arith.constant 0 : i32
      %41 = tpu.memref_slice %arg4[%40, %c0_i32_28] : memref<300x128xf32, #tpu.memory_space<any>> -> memref<1x128xf32, #tpu.memory_space<any>>
      %c6_i32_29 = arith.constant 6 : i32
      %c0_i32_30 = arith.constant 0 : i32
      %42 = tpu.memref_slice %arg16[%c6_i32_29, %c0_i32_30] : memref<8x128xf32, #tpu.memory_space<vmem>> -> memref<1x128xf32, #tpu.memory_space<vmem>>
      %43 = tpu.memref_slice %arg18[%c6_i32] : memref<8x!tpu.dma_semaphore, #tpu.memory_space<semaphore_mem>> -> memref<1x!tpu.dma_semaphore, #tpu.memory_space<semaphore_mem>>
      %44 = tpu.memref_squeeze %43 : memref<1x!tpu.dma_semaphore, #tpu.memory_space<semaphore_mem>> -> memref<!tpu.dma_semaphore, #tpu.memory_space<semaphore_mem>>
      tpu.enqueue_dma source(%41 : memref<1x128xf32, #tpu.memory_space<any>>) target(%42 : memref<1x128xf32, #tpu.memory_space<vmem>>) target_semaphore(%44 : memref<!tpu.dma_semaphore, #tpu.memory_space<semaphore_mem>>)
      %c7 = arith.constant 7 : index
      %45 = memref.load %arg1[%c7] : memref<8xi32, #tpu.memory_space<smem>>
      %c7_i32 = arith.constant 7 : i32
      %c0_i32_31 = arith.constant 0 : i32
      %46 = tpu.memref_slice %arg4[%45, %c0_i32_31] : memref<300x128xf32, #tpu.memory_space<any>> -> memref<1x128xf32, #tpu.memory_space<any>>
      %c7_i32_32 = arith.constant 7 : i32
      %c0_i32_33 = arith.constant 0 : i32
      %47 = tpu.memref_slice %arg16[%c7_i32_32, %c0_i32_33] : memref<8x128xf32, #tpu.memory_space<vmem>> -> memref<1x128xf32, #tpu.memory_space<vmem>>
      %48 = tpu.memref_slice %arg18[%c7_i32] : memref<8x!tpu.dma_semaphore, #tpu.memory_space<semaphore_mem>> -> memref<1x!tpu.dma_semaphore, #tpu.memory_space<semaphore_mem>>
      %49 = tpu.memref_squeeze %48 : memref<1x!tpu.dma_semaphore, #tpu.memory_space<semaphore_mem>> -> memref<!tpu.dma_semaphore, #tpu.memory_space<semaphore_mem>>
      tpu.enqueue_dma source(%46 : memref<1x128xf32, #tpu.memory_space<any>>) target(%47 : memref<1x128xf32, #tpu.memory_space<vmem>>) target_semaphore(%49 : memref<!tpu.dma_semaphore, #tpu.memory_space<semaphore_mem>>)
      %c0_i32_34 = arith.constant 0 : i32
      %c0_i32_35 = arith.constant 0 : i32
      %50 = tpu.memref_slice %arg4[%10, %c0_i32_35] : memref<300x128xf32, #tpu.memory_space<any>> -> memref<1x128xf32, #tpu.memory_space<any>>
      %c0_i32_36 = arith.constant 0 : i32
      %c0_i32_37 = arith.constant 0 : i32
      %51 = tpu.memref_slice %arg16[%c0_i32_36, %c0_i32_37] : memref<8x128xf32, #tpu.memory_space<vmem>> -> memref<1x128xf32, #tpu.memory_space<vmem>>
      %52 = tpu.memref_slice %arg18[%c0_i32_34] : memref<8x!tpu.dma_semaphore, #tpu.memory_space<semaphore_mem>> -> memref<1x!tpu.dma_semaphore, #tpu.memory_space<semaphore_mem>>
      %53 = tpu.memref_squeeze %52 : memref<1x!tpu.dma_semaphore, #tpu.memory_space<semaphore_mem>> -> memref<!tpu.dma_semaphore, #tpu.memory_space<semaphore_mem>>
      tpu.wait_dma2 semaphore(%53 : memref<!tpu.dma_semaphore, #tpu.memory_space<semaphore_mem>>) src(%50 : memref<1x128xf32, #tpu.memory_space<any>>) dst(%51 : memref<1x128xf32, #tpu.memory_space<vmem>>)
      %c1_i32_38 = arith.constant 1 : i32
      %c0_i32_39 = arith.constant 0 : i32
      %54 = tpu.memref_slice %arg4[%15, %c0_i32_39] : memref<300x128xf32, #tpu.memory_space<any>> -> memref<1x128xf32, #tpu.memory_space<any>>
      %c1_i32_40 = arith.constant 1 : i32
      %c0_i32_41 = arith.constant 0 : i32
      %55 = tpu.memref_slice %arg16[%c1_i32_40, %c0_i32_41] : memref<8x128xf32, #tpu.memory_space<vmem>> -> memref<1x128xf32, #tpu.memory_space<vmem>>
      %56 = tpu.memref_slice %arg18[%c1_i32_38] : memref<8x!tpu.dma_semaphore, #tpu.memory_space<semaphore_mem>> -> memref<1x!tpu.dma_semaphore, #tpu.memory_space<semaphore_mem>>
      %57 = tpu.memref_squeeze %56 : memref<1x!tpu.dma_semaphore, #tpu.memory_space<semaphore_mem>> -> memref<!tpu.dma_semaphore, #tpu.memory_space<semaphore_mem>>
      tpu.wait_dma2 semaphore(%57 : memref<!tpu.dma_semaphore, #tpu.memory_space<semaphore_mem>>) src(%54 : memref<1x128xf32, #tpu.memory_space<any>>) dst(%55 : memref<1x128xf32, #tpu.memory_space<vmem>>)
      %c2_i32_42 = arith.constant 2 : i32
      %c0_i32_43 = arith.constant 0 : i32
      %58 = tpu.memref_slice %arg4[%20, %c0_i32_43] : memref<300x128xf32, #tpu.memory_space<any>> -> memref<1x128xf32, #tpu.memory_space<any>>
      %c2_i32_44 = arith.constant 2 : i32
      %c0_i32_45 = arith.constant 0 : i32
      %59 = tpu.memref_slice %arg16[%c2_i32_44, %c0_i32_45] : memref<8x128xf32, #tpu.memory_space<vmem>> -> memref<1x128xf32, #tpu.memory_space<vmem>>
      %60 = tpu.memref_slice %arg18[%c2_i32_42] : memref<8x!tpu.dma_semaphore, #tpu.memory_space<semaphore_mem>> -> memref<1x!tpu.dma_semaphore, #tpu.memory_space<semaphore_mem>>
      %61 = tpu.memref_squeeze %60 : memref<1x!tpu.dma_semaphore, #tpu.memory_space<semaphore_mem>> -> memref<!tpu.dma_semaphore, #tpu.memory_space<semaphore_mem>>
      tpu.wait_dma2 semaphore(%61 : memref<!tpu.dma_semaphore, #tpu.memory_space<semaphore_mem>>) src(%58 : memref<1x128xf32, #tpu.memory_space<any>>) dst(%59 : memref<1x128xf32, #tpu.memory_space<vmem>>)
      %c3_i32_46 = arith.constant 3 : i32
      %c0_i32_47 = arith.constant 0 : i32
      %62 = tpu.memref_slice %arg4[%25, %c0_i32_47] : memref<300x128xf32, #tpu.memory_space<any>> -> memref<1x128xf32, #tpu.memory_space<any>>
      %c3_i32_48 = arith.constant 3 : i32
      %c0_i32_49 = arith.constant 0 : i32
      %63 = tpu.memref_slice %arg16[%c3_i32_48, %c0_i32_49] : memref<8x128xf32, #tpu.memory_space<vmem>> -> memref<1x128xf32, #tpu.memory_space<vmem>>
      %64 = tpu.memref_slice %arg18[%c3_i32_46] : memref<8x!tpu.dma_semaphore, #tpu.memory_space<semaphore_mem>> -> memref<1x!tpu.dma_semaphore, #tpu.memory_space<semaphore_mem>>
      %65 = tpu.memref_squeeze %64 : memref<1x!tpu.dma_semaphore, #tpu.memory_space<semaphore_mem>> -> memref<!tpu.dma_semaphore, #tpu.memory_space<semaphore_mem>>
      tpu.wait_dma2 semaphore(%65 : memref<!tpu.dma_semaphore, #tpu.memory_space<semaphore_mem>>) src(%62 : memref<1x128xf32, #tpu.memory_space<any>>) dst(%63 : memref<1x128xf32, #tpu.memory_space<vmem>>)
      %c4_i32_50 = arith.constant 4 : i32
      %c0_i32_51 = arith.constant 0 : i32
      %66 = tpu.memref_slice %arg4[%30, %c0_i32_51] : memref<300x128xf32, #tpu.memory_space<any>> -> memref<1x128xf32, #tpu.memory_space<any>>
      %c4_i32_52 = arith.constant 4 : i32
      %c0_i32_53 = arith.constant 0 : i32
      %67 = tpu.memref_slice %arg16[%c4_i32_52, %c0_i32_53] : memref<8x128xf32, #tpu.memory_space<vmem>> -> memref<1x128xf32, #tpu.memory_space<vmem>>
      %68 = tpu.memref_slice %arg18[%c4_i32_50] : memref<8x!tpu.dma_semaphore, #tpu.memory_space<semaphore_mem>> -> memref<1x!tpu.dma_semaphore, #tpu.memory_space<semaphore_mem>>
      %69 = tpu.memref_squeeze %68 : memref<1x!tpu.dma_semaphore, #tpu.memory_space<semaphore_mem>> -> memref<!tpu.dma_semaphore, #tpu.memory_space<semaphore_mem>>
      tpu.wait_dma2 semaphore(%69 : memref<!tpu.dma_semaphore, #tpu.memory_space<semaphore_mem>>) src(%66 : memref<1x128xf32, #tpu.memory_space<any>>) dst(%67 : memref<1x128xf32, #tpu.memory_space<vmem>>)
      %c5_i32_54 = arith.constant 5 : i32
      %c0_i32_55 = arith.constant 0 : i32
      %70 = tpu.memref_slice %arg4[%35, %c0_i32_55] : memref<300x128xf32, #tpu.memory_space<any>> -> memref<1x128xf32, #tpu.memory_space<any>>
      %c5_i32_56 = arith.constant 5 : i32
      %c0_i32_57 = arith.constant 0 : i32
      %71 = tpu.memref_slice %arg16[%c5_i32_56, %c0_i32_57] : memref<8x128xf32, #tpu.memory_space<vmem>> -> memref<1x128xf32, #tpu.memory_space<vmem>>
      %72 = tpu.memref_slice %arg18[%c5_i32_54] : memref<8x!tpu.dma_semaphore, #tpu.memory_space<semaphore_mem>> -> memref<1x!tpu.dma_semaphore, #tpu.memory_space<semaphore_mem>>
      %73 = tpu.memref_squeeze %72 : memref<1x!tpu.dma_semaphore, #tpu.memory_space<semaphore_mem>> -> memref<!tpu.dma_semaphore, #tpu.memory_space<semaphore_mem>>
      tpu.wait_dma2 semaphore(%73 : memref<!tpu.dma_semaphore, #tpu.memory_space<semaphore_mem>>) src(%70 : memref<1x128xf32, #tpu.memory_space<any>>) dst(%71 : memref<1x128xf32, #tpu.memory_space<vmem>>)
      %c6_i32_58 = arith.constant 6 : i32
      %c0_i32_59 = arith.constant 0 : i32
      %74 = tpu.memref_slice %arg4[%40, %c0_i32_59] : memref<300x128xf32, #tpu.memory_space<any>> -> memref<1x128xf32, #tpu.memory_space<any>>
      %c6_i32_60 = arith.constant 6 : i32
      %c0_i32_61 = arith.constant 0 : i32
      %75 = tpu.memref_slice %arg16[%c6_i32_60, %c0_i32_61] : memref<8x128xf32, #tpu.memory_space<vmem>> -> memref<1x128xf32, #tpu.memory_space<vmem>>
      %76 = tpu.memref_slice %arg18[%c6_i32_58] : memref<8x!tpu.dma_semaphore, #tpu.memory_space<semaphore_mem>> -> memref<1x!tpu.dma_semaphore, #tpu.memory_space<semaphore_mem>>
      %77 = tpu.memref_squeeze %76 : memref<1x!tpu.dma_semaphore, #tpu.memory_space<semaphore_mem>> -> memref<!tpu.dma_semaphore, #tpu.memory_space<semaphore_mem>>
      tpu.wait_dma2 semaphore(%77 : memref<!tpu.dma_semaphore, #tpu.memory_space<semaphore_mem>>) src(%74 : memref<1x128xf32, #tpu.memory_space<any>>) dst(%75 : memref<1x128xf32, #tpu.memory_space<vmem>>)
      %c7_i32_62 = arith.constant 7 : i32
      %c0_i32_63 = arith.constant 0 : i32
      %78 = tpu.memref_slice %arg4[%45, %c0_i32_63] : memref<300x128xf32, #tpu.memory_space<any>> -> memref<1x128xf32, #tpu.memory_space<any>>
      %c7_i32_64 = arith.constant 7 : i32
      %c0_i32_65 = arith.constant 0 : i32
      %79 = tpu.memref_slice %arg16[%c7_i32_64, %c0_i32_65] : memref<8x128xf32, #tpu.memory_space<vmem>> -> memref<1x128xf32, #tpu.memory_space<vmem>>
      %80 = tpu.memref_slice %arg18[%c7_i32_62] : memref<8x!tpu.dma_semaphore, #tpu.memory_space<semaphore_mem>> -> memref<1x!tpu.dma_semaphore, #tpu.memory_space<semaphore_mem>>
      %81 = tpu.memref_squeeze %80 : memref<1x!tpu.dma_semaphore, #tpu.memory_space<semaphore_mem>> -> memref<!tpu.dma_semaphore, #tpu.memory_space<semaphore_mem>>
      tpu.wait_dma2 semaphore(%81 : memref<!tpu.dma_semaphore, #tpu.memory_space<semaphore_mem>>) src(%78 : memref<1x128xf32, #tpu.memory_space<any>>) dst(%79 : memref<1x128xf32, #tpu.memory_space<vmem>>)
      %c0_66 = arith.constant 0 : index
      %c0_67 = arith.constant 0 : index
      %82 = vector.load %arg16[%c0_66, %c0_67] : memref<8x128xf32, #tpu.memory_space<vmem>>, vector<8x128xf32>
      %c0_68 = arith.constant 0 : index
      %c0_69 = arith.constant 0 : index
      %83 = vector.load %arg7[%c0_68, %c0_69] : memref<128x512xf32, #tpu.memory_space<vmem>>, vector<128x512xf32>
      %c0_70 = arith.constant 0 : index
      %c0_71 = arith.constant 0 : index
      %84 = vector.load %arg8[%c0_70, %c0_71] : memref<128x512xf32, #tpu.memory_space<vmem>>, vector<128x512xf32>
      %c0_72 = arith.constant 0 : index
      %c0_73 = arith.constant 0 : index
      %85 = vector.load %arg9[%c0_72, %c0_73] : memref<1x512xf32, #tpu.memory_space<vmem>>, vector<1x512xf32>
      %c0_74 = arith.constant 0 : index
      %c0_75 = arith.constant 0 : index
      %c0_76 = arith.constant 0 : index
      %86 = vector.load %arg2[%c0_74, %c0_75, %c0_76] : memref<2x8x128xf32, #tpu.memory_space<vmem>>, vector<1x8x128xf32>
      %87 = vector.shape_cast %86 : vector<1x8x128xf32> to vector<8x128xf32>
      %c0_77 = arith.constant 0 : index
      %c0_78 = arith.constant 0 : index
      %c0_79 = arith.constant 0 : index
      %88 = vector.load %arg3[%c0_77, %c0_78, %c0_79] : memref<2x8x128xf32, #tpu.memory_space<vmem>>, vector<1x8x128xf32>
      %89 = vector.shape_cast %88 : vector<1x8x128xf32> to vector<8x128xf32>
      %cst_80 = arith.constant dense<0.000000e+00> : vector<8x512xf32>
      %90 = tpu.matmul %82, %83, %cst_80 {dimension_numbers = #tpu.dot_dimension_numbers<[1], [0], [0], [1], [0, 0, 1, 1], [], []>} : vector<8x128xf32>, vector<128x512xf32>, vector<8x512xf32> -> vector<8x512xf32>
      %cst_81 = arith.constant dense<0.000000e+00> : vector<8x512xf32>
      %91 = tpu.matmul %87, %84, %cst_81 {dimension_numbers = #tpu.dot_dimension_numbers<[1], [0], [0], [1], [0, 0, 1, 1], [], []>} : vector<8x128xf32>, vector<128x512xf32>, vector<8x512xf32> -> vector<8x512xf32>
      %92 = arith.addf %90, %91 : vector<8x512xf32>
      %93 = vector.broadcast %85 : vector<1x512xf32> to vector<8x512xf32>
      %94 = arith.addf %92, %93 : vector<8x512xf32>
      %95 = vector.extract_strided_slice %94 {offsets = [0, 0], sizes = [8, 128], strides = [1, 1]} : vector<8x512xf32> to vector<8x128xf32>
      %96 = arith.negf %95 : vector<8x128xf32>
      %97 = math.exp %96 : vector<8x128xf32>
      %cst_82 = arith.constant 1.000000e+00 : f32
      %98 = vector.broadcast %cst_82 : f32 to vector<8x128xf32>
      %99 = arith.addf %98, %97 : vector<8x128xf32>
      %100 = arith.divf %98, %99 : vector<8x128xf32>
      %101 = vector.extract_strided_slice %94 {offsets = [0, 128], sizes = [8, 128], strides = [1, 1]} : vector<8x512xf32> to vector<8x128xf32>
      %102 = arith.negf %101 : vector<8x128xf32>
      %103 = math.exp %102 : vector<8x128xf32>
      %cst_83 = arith.constant 1.000000e+00 : f32
      %104 = vector.broadcast %cst_83 : f32 to vector<8x128xf32>
      %105 = arith.addf %104, %103 : vector<8x128xf32>
      %106 = arith.divf %104, %105 : vector<8x128xf32>
      %107 = vector.extract_strided_slice %94 {offsets = [0, 256], sizes = [8, 128], strides = [1, 1]} : vector<8x512xf32> to vector<8x128xf32>
      %108 = math.tanh %107 : vector<8x128xf32>
      %109 = vector.extract_strided_slice %94 {offsets = [0, 384], sizes = [8, 128], strides = [1, 1]} : vector<8x512xf32> to vector<8x128xf32>
      %110 = arith.negf %109 : vector<8x128xf32>
      %111 = math.exp %110 : vector<8x128xf32>
      %cst_84 = arith.constant 1.000000e+00 : f32
      %112 = vector.broadcast %cst_84 : f32 to vector<8x128xf32>
      %113 = arith.addf %112, %111 : vector<8x128xf32>
      %114 = arith.divf %112, %113 : vector<8x128xf32>
      %115 = arith.mulf %106, %89 : vector<8x128xf32>
      %116 = arith.mulf %100, %108 : vector<8x128xf32>
      %117 = arith.addf %115, %116 : vector<8x128xf32>
      %118 = math.tanh %117 : vector<8x128xf32>
      %119 = arith.mulf %114, %118 : vector<8x128xf32>
      %c0_85 = arith.constant 0 : index
      %c0_86 = arith.constant 0 : index
      %c0_87 = arith.constant 0 : index
      %120 = vector.load %arg14[%c0_85, %c0_86, %c0_87] : memref<2x8x128xf32, #tpu.memory_space<vmem>>, vector<1x8x128xf32>
      %121 = vector.shape_cast %120 : vector<1x8x128xf32> to vector<8x128xf32>
      %122 = vector.shape_cast %119 : vector<8x128xf32> to vector<1x8x128xf32>
      tpu.vector_store %arg14[%c0_85, %c0_86, %c0_87], %122 {strides = array<i32>} : memref<2x8x128xf32, #tpu.memory_space<vmem>>, vector<1x8x128xf32>,
      %c0_88 = arith.constant 0 : index
      %c0_89 = arith.constant 0 : index
      %c0_90 = arith.constant 0 : index
      %123 = vector.load %arg15[%c0_88, %c0_89, %c0_90] : memref<2x8x128xf32, #tpu.memory_space<vmem>>, vector<1x8x128xf32>
      %124 = vector.shape_cast %123 : vector<1x8x128xf32> to vector<8x128xf32>
      %125 = vector.shape_cast %117 : vector<8x128xf32> to vector<1x8x128xf32>
      tpu.vector_store %arg15[%c0_88, %c0_89, %c0_90], %125 {strides = array<i32>} : memref<2x8x128xf32, #tpu.memory_space<vmem>>, vector<1x8x128xf32>,
      %c0_91 = arith.constant 0 : index
      %c0_92 = arith.constant 0 : index
      %126 = vector.load %arg10[%c0_91, %c0_92] : memref<128x512xf32, #tpu.memory_space<vmem>>, vector<128x512xf32>
      %c0_93 = arith.constant 0 : index
      %c0_94 = arith.constant 0 : index
      %127 = vector.load %arg11[%c0_93, %c0_94] : memref<128x512xf32, #tpu.memory_space<vmem>>, vector<128x512xf32>
      %c0_95 = arith.constant 0 : index
      %c0_96 = arith.constant 0 : index
      %128 = vector.load %arg12[%c0_95, %c0_96] : memref<1x512xf32, #tpu.memory_space<vmem>>, vector<1x512xf32>
      %c1_97 = arith.constant 1 : index
      %c0_98 = arith.constant 0 : index
      %c0_99 = arith.constant 0 : index
      %129 = vector.load %arg2[%c1_97, %c0_98, %c0_99] : memref<2x8x128xf32, #tpu.memory_space<vmem>>, vector<1x8x128xf32>
      %130 = vector.shape_cast %129 : vector<1x8x128xf32> to vector<8x128xf32>
      %c1_100 = arith.constant 1 : index
      %c0_101 = arith.constant 0 : index
      %c0_102 = arith.constant 0 : index
      %131 = vector.load %arg3[%c1_100, %c0_101, %c0_102] : memref<2x8x128xf32, #tpu.memory_space<vmem>>, vector<1x8x128xf32>
      %132 = vector.shape_cast %131 : vector<1x8x128xf32> to vector<8x128xf32>
      %cst_103 = arith.constant dense<0.000000e+00> : vector<8x512xf32>
      %133 = tpu.matmul %119, %126, %cst_103 {dimension_numbers = #tpu.dot_dimension_numbers<[1], [0], [0], [1], [0, 0, 1, 1], [], []>} : vector<8x128xf32>, vector<128x512xf32>, vector<8x512xf32> -> vector<8x512xf32>
      %cst_104 = arith.constant dense<0.000000e+00> : vector<8x512xf32>
      %134 = tpu.matmul %130, %127, %cst_104 {dimension_numbers = #tpu.dot_dimension_numbers<[1], [0], [0], [1], [0, 0, 1, 1], [], []>} : vector<8x128xf32>, vector<128x512xf32>, vector<8x512xf32> -> vector<8x512xf32>
      %135 = arith.addf %133, %134 : vector<8x512xf32>
      %136 = vector.broadcast %128 : vector<1x512xf32> to vector<8x512xf32>
      %137 = arith.addf %135, %136 : vector<8x512xf32>
      %138 = vector.extract_strided_slice %137 {offsets = [0, 0], sizes = [8, 128], strides = [1, 1]} : vector<8x512xf32> to vector<8x128xf32>
      %139 = arith.negf %138 : vector<8x128xf32>
      %140 = math.exp %139 : vector<8x128xf32>
      %cst_105 = arith.constant 1.000000e+00 : f32
      %141 = vector.broadcast %cst_105 : f32 to vector<8x128xf32>
      %142 = arith.addf %141, %140 : vector<8x128xf32>
      %143 = arith.divf %141, %142 : vector<8x128xf32>
      %144 = vector.extract_strided_slice %137 {offsets = [0, 128], sizes = [8, 128], strides = [1, 1]} : vector<8x512xf32> to vector<8x128xf32>
      %145 = arith.negf %144 : vector<8x128xf32>
      %146 = math.exp %145 : vector<8x128xf32>
      %cst_106 = arith.constant 1.000000e+00 : f32
      %147 = vector.broadcast %cst_106 : f32 to vector<8x128xf32>
      %148 = arith.addf %147, %146 : vector<8x128xf32>
      %149 = arith.divf %147, %148 : vector<8x128xf32>
      %150 = vector.extract_strided_slice %137 {offsets = [0, 256], sizes = [8, 128], strides = [1, 1]} : vector<8x512xf32> to vector<8x128xf32>
      %151 = math.tanh %150 : vector<8x128xf32>
      %152 = vector.extract_strided_slice %137 {offsets = [0, 384], sizes = [8, 128], strides = [1, 1]} : vector<8x512xf32> to vector<8x128xf32>
      %153 = arith.negf %152 : vector<8x128xf32>
      %154 = math.exp %153 : vector<8x128xf32>
      %cst_107 = arith.constant 1.000000e+00 : f32
      %155 = vector.broadcast %cst_107 : f32 to vector<8x128xf32>
      %156 = arith.addf %155, %154 : vector<8x128xf32>
      %157 = arith.divf %155, %156 : vector<8x128xf32>
      %158 = arith.mulf %149, %132 : vector<8x128xf32>
      %159 = arith.mulf %143, %151 : vector<8x128xf32>
      %160 = arith.addf %158, %159 : vector<8x128xf32>
      %161 = math.tanh %160 : vector<8x128xf32>
      %162 = arith.mulf %157, %161 : vector<8x128xf32>
      %c1_108 = arith.constant 1 : index
      %c0_109 = arith.constant 0 : index
      %c0_110 = arith.constant 0 : index
      %163 = vector.load %arg14[%c1_108, %c0_109, %c0_110] : memref<2x8x128xf32, #tpu.memory_space<vmem>>, vector<1x8x128xf32>
      %164 = vector.shape_cast %163 : vector<1x8x128xf32> to vector<8x128xf32>
      %165 = vector.shape_cast %162 : vector<8x128xf32> to vector<1x8x128xf32>
      tpu.vector_store %arg14[%c1_108, %c0_109, %c0_110], %165 {strides = array<i32>} : memref<2x8x128xf32, #tpu.memory_space<vmem>>, vector<1x8x128xf32>,
      %c1_111 = arith.constant 1 : index
      %c0_112 = arith.constant 0 : index
      %c0_113 = arith.constant 0 : index
      %166 = vector.load %arg15[%c1_111, %c0_112, %c0_113] : memref<2x8x128xf32, #tpu.memory_space<vmem>>, vector<1x8x128xf32>
      %167 = vector.shape_cast %166 : vector<1x8x128xf32> to vector<8x128xf32>
      %168 = vector.shape_cast %160 : vector<8x128xf32> to vector<1x8x128xf32>
      tpu.vector_store %arg15[%c1_111, %c0_112, %c0_113], %168 {strides = array<i32>} : memref<2x8x128xf32, #tpu.memory_space<vmem>>, vector<1x8x128xf32>,
      %c0_114 = arith.constant 0 : index
      %c0_115 = arith.constant 0 : index
      %169 = vector.load %arg17[%c0_114, %c0_115] : memref<8x128xf32, #tpu.memory_space<vmem>>, vector<8x128xf32>
      tpu.vector_store %arg17[%c0_114, %c0_115], %162 {strides = array<i32>} : memref<8x128xf32, #tpu.memory_space<vmem>>, vector<8x128xf32>,
    } else {
    }
    %c0 = arith.constant 0 : index
    %c0_1 = arith.constant 0 : index
    %3 = vector.load %arg17[%c0, %c0_1] : memref<8x128xf32, #tpu.memory_space<vmem>>, vector<8x128xf32>
    %c0_2 = arith.constant 0 : index
    %c0_3 = arith.constant 0 : index
    %4 = vector.load %arg5[%c0_2, %c0_3] : memref<128x128xf32, #tpu.memory_space<vmem>>, vector<128x128xf32>
    %cst = arith.constant dense<0.000000e+00> : vector<8x128xf32>
    %5 = tpu.matmul %3, %4, %cst {dimension_numbers = #tpu.dot_dimension_numbers<[1], [0], [0], [1], [0, 0, 1, 1], [], []>} : vector<8x128xf32>, vector<128x128xf32>, vector<8x128xf32> -> vector<8x128xf32>
    %c0_4 = arith.constant 0 : index
    %c0_5 = arith.constant 0 : index
    %6 = vector.load %arg6[%c0_4, %c0_5] : memref<1x128xf32, #tpu.memory_space<vmem>>, vector<1x128xf32>
    %7 = vector.broadcast %6 : vector<1x128xf32> to vector<8x128xf32>
    %8 = arith.addf %5, %7 : vector<8x128xf32>
    %c0_6 = arith.constant 0 : index
    %c0_7 = arith.constant 0 : index
    %9 = vector.load %arg13[%c0_6, %c0_7] : memref<8x128xf32, #tpu.memory_space<vmem>>, vector<8x128xf32>
    tpu.vector_store %arg13[%c0_6, %c0_7], %8 {strides = array<i32>} : memref<8x128xf32, #tpu.memory_space<vmem>>, vector<8x128xf32>,
    return
  }
  func.func @transform_0(%arg0: i32, %arg1: memref<8xi32, #tpu.memory_space<smem>>) -> (i32, i32, i32) {
    %c0_i32 = arith.constant 0 : i32
    %c0_i32_0 = arith.constant 0 : i32
    %c0_i32_1 = arith.constant 0 : i32
    %c0_i32_2 = arith.constant 0 : i32
    return %c0_i32, %c0_i32_0, %c0_i32_1 : i32, i32, i32
  }
  func.func @transform_1(%arg0: i32, %arg1: memref<8xi32, #tpu.memory_space<smem>>) -> (i32, i32, i32) {
    %c0_i32 = arith.constant 0 : i32
    %c0_i32_0 = arith.constant 0 : i32
    %c0_i32_1 = arith.constant 0 : i32
    %c0_i32_2 = arith.constant 0 : i32
    return %c0_i32, %c0_i32_0, %c0_i32_1 : i32, i32, i32
  }
  func.func @transform_3(%arg0: i32, %arg1: memref<8xi32, #tpu.memory_space<smem>>) -> (i32, i32) {
    %c0_i32 = arith.constant 0 : i32
    %c0_i32_0 = arith.constant 0 : i32
    return %c0_i32, %arg0 : i32, i32
  }
  func.func @transform_4(%arg0: i32, %arg1: memref<8xi32, #tpu.memory_space<smem>>) -> (i32, i32) {
    %c0_i32 = arith.constant 0 : i32
    %c0_i32_0 = arith.constant 0 : i32
    return %c0_i32, %arg0 : i32, i32
  }
  func.func @transform_5(%arg0: i32, %arg1: memref<8xi32, #tpu.memory_space<smem>>) -> (i32, i32) {
    %c0_i32 = arith.constant 0 : i32
    %c0_i32_0 = arith.constant 0 : i32
    %c0_i32_1 = arith.constant 0 : i32
    return %c0_i32, %c0_i32_0 : i32, i32
  }
  func.func @transform_6(%arg0: i32, %arg1: memref<8xi32, #tpu.memory_space<smem>>) -> (i32, i32) {
    %c0_i32 = arith.constant 0 : i32
    %c0_i32_0 = arith.constant 0 : i32
    %c0_i32_1 = arith.constant 0 : i32
    return %c0_i32, %c0_i32_0 : i32, i32
  }
  func.func @transform_7(%arg0: i32, %arg1: memref<8xi32, #tpu.memory_space<smem>>) -> (i32, i32) {
    %c0_i32 = arith.constant 0 : i32
    %c0_i32_0 = arith.constant 0 : i32
    %c0_i32_1 = arith.constant 0 : i32
    return %c0_i32, %c0_i32_0 : i32, i32
  }
  func.func @transform_8(%arg0: i32, %arg1: memref<8xi32, #tpu.memory_space<smem>>) -> (i32, i32) {
    %c0_i32 = arith.constant 0 : i32
    %c0_i32_0 = arith.constant 0 : i32
    %c0_i32_1 = arith.constant 0 : i32
    return %c0_i32, %c0_i32_0 : i32, i32
  }
  func.func @transform_9(%arg0: i32, %arg1: memref<8xi32, #tpu.memory_space<smem>>) -> (i32, i32) {
    %c0_i32 = arith.constant 0 : i32
    %c0_i32_0 = arith.constant 0 : i32
    %c0_i32_1 = arith.constant 0 : i32
    return %c0_i32, %c0_i32_0 : i32, i32
  }
  func.func @transform_10(%arg0: i32, %arg1: memref<8xi32, #tpu.memory_space<smem>>) -> (i32, i32) {
    %c0_i32 = arith.constant 0 : i32
    %c0_i32_0 = arith.constant 0 : i32
    %c0_i32_1 = arith.constant 0 : i32
    return %c0_i32, %c0_i32_0 : i32, i32
  }
  func.func @transform_11(%arg0: i32, %arg1: memref<8xi32, #tpu.memory_space<smem>>) -> (i32, i32) {
    %c0_i32 = arith.constant 0 : i32
    %c0_i32_0 = arith.constant 0 : i32
    return %c0_i32, %arg0 : i32, i32
  }
  func.func @transform_12(%arg0: i32, %arg1: memref<8xi32, #tpu.memory_space<smem>>) -> (i32, i32, i32) {
    %c0_i32 = arith.constant 0 : i32
    %c0_i32_0 = arith.constant 0 : i32
    %c0_i32_1 = arith.constant 0 : i32
    %c0_i32_2 = arith.constant 0 : i32
    return %c0_i32, %c0_i32_0, %c0_i32_1 : i32, i32, i32
  }
  func.func @transform_13(%arg0: i32, %arg1: memref<8xi32, #tpu.memory_space<smem>>) -> (i32, i32, i32) {
    %c0_i32 = arith.constant 0 : i32
    %c0_i32_0 = arith.constant 0 : i32
    %c0_i32_1 = arith.constant 0 : i32
    %c0_i32_2 = arith.constant 0 : i32
    return %c0_i32, %c0_i32_0, %c0_i32_1 : i32, i32, i32
  }
}

</mosaic_0001>

<llo_original>
// kernel: one_step_decoder_forward.1
$region0: #{one_step_decoder_forward.1}
  #allocation0 [shape = 'u32[]', space=smem, size = 0x4, offset = 0x4, fixed_abs, tag = 'smem constant byte address 0x4 - core index']
  #allocation1 [shape = 'u32[72,128]{1,0:T(1,128)}', space=vmem, size = 0x9000, scoped, tag = 'internal scratch']
  #allocation2 [shape = 'f32[8,128]{1,0:T(8,128)}', space=vmem, size = 0x1000, scoped, tag = 'scratch operand']
  #allocation3 [shape = 'f32[8,128]{1,0:T(8,128)}', space=vmem, size = 0x1000, scoped, tag = 'scratch operand']
  #allocation4 [shape = 's32[8]{0}', space=sflag, size = 0x20, scoped, tag = 'scratch operand']
  #allocation5 [shape = 's32[1]{0}', space=sflag, size = 0x4, scoped, tag = 'scoped memory for one_step_decoder_forward.1']
  #allocation6 [shape = 'u8[512]{0}', space=smem, size = 0x200, scoped, tag = 'prefetched SMEM operand 0']
  #allocation23 [shape = 's32[]', space=sflag, size = 0x4, offset = 0, fixed_abs, tag = 'sflag constant byte address 0x0 - dummy sync flag']
  #allocation24 [shape = 's32[]', space=sflag, size = 0x4, offset = 0, fixed_abs, tag = 'sflag constant byte address 0x0 - dummy sync flag']
  #allocation25 [shape = 'u32[]', space=smem, size = 0x4, offset = 0x44, fixed_abs, tag = 'smem constant byte address 0x44 - assertion arg 0']
  #allocation26 [shape = 'u32[]', space=smem, size = 0x4, offset = 0x48, fixed_abs, tag = 'smem constant byte address 0x48 - assertion arg 1']
  #allocation27 [shape = 's32[]', space=sflag, size = 0x4, offset = 0, fixed_abs, tag = 'sflag constant byte address 0x0 - dummy sync flag']
  #allocation28 [shape = 's32[]', space=sflag, size = 0x4, offset = 0, fixed_abs, tag = 'sflag constant byte address 0x0 - dummy sync flag']
  #allocation29 [shape = 's32[]', space=sflag, size = 0x4, offset = 0, fixed_abs, tag = 'sflag constant byte address 0x0 - dummy sync flag']
  #allocation30 [shape = 's32[]', space=sflag, size = 0x4, offset = 0, fixed_abs, tag = 'sflag constant byte address 0x0 - dummy sync flag']
  #allocation31 [shape = 's32[]', space=sflag, size = 0x4, offset = 0, fixed_abs, tag = 'sflag constant byte address 0x0 - dummy sync flag']
  #allocation32 [shape = 's32[]', space=sflag, size = 0x4, offset = 0, fixed_abs, tag = 'sflag constant byte address 0x0 - dummy sync flag']
  #allocation33 [shape = 's32[]', space=sflag, size = 0x4, offset = 0, fixed_abs, tag = 'sflag constant byte address 0x0 - dummy sync flag']
  #allocation34 [shape = 's32[]', space=sflag, size = 0x4, offset = 0, fixed_abs, tag = 'sflag constant byte address 0x0 - dummy sync flag']
  #allocation35 [shape = 's32[]', space=sflag, size = 0x4, offset = 0, fixed_abs, tag = 'sflag constant byte address 0x0 - dummy sync flag']
  #allocation36 [shape = 's32[]', space=sflag, size = 0x4, offset = 0, fixed_abs, tag = 'sflag constant byte address 0x0 - dummy sync flag']
  #allocation37 [shape = 's32[]', space=sflag, size = 0x4, offset = 0, fixed_abs, tag = 'sflag constant byte address 0x0 - dummy sync flag']
  #allocation38 [shape = 's32[]', space=sflag, size = 0x4, offset = 0, fixed_abs, tag = 'sflag constant byte address 0x0 - dummy sync flag']
  #allocation39 [shape = 's32[]', space=sflag, size = 0x4, offset = 0, fixed_abs, tag = 'sflag constant byte address 0x0 - dummy sync flag']
  #allocation40 [shape = 's32[]', space=sflag, size = 0x4, offset = 0, fixed_abs, tag = 'sflag constant byte address 0x0 - dummy sync flag']
  %s0 = inlined_call_operand.vmem [shape: s32[8], index: 0, kind: input, shape index: {}]
  %s1 = inlined_call_operand.hbm [shape: f32[2,8,128], index: 1, kind: input, shape index: {}, may-alias: {1,13}]
  %s2 = inlined_call_operand.hbm [shape: f32[2,8,128], index: 2, kind: input, shape index: {}, may-alias: {2,14}]
  %s3 = inlined_call_operand.hbm [shape: f32[300,128], index: 3, kind: input, shape index: {}]
  %s4 = inlined_call_operand.hbm [shape: f32[128,384], index: 4, kind: input, shape index: {}]
  %s5 = inlined_call_operand.vmem [shape: f32[1,384], index: 5, kind: input, shape index: {}]
  %s6 = inlined_call_operand.hbm [shape: f32[128,512], index: 6, kind: input, shape index: {}]
  %s7 = inlined_call_operand.hbm [shape: f32[128,512], index: 7, kind: input, shape index: {}]
  %s8 = inlined_call_operand.vmem [shape: f32[1,512], index: 8, kind: input, shape index: {}]
  %s9 = inlined_call_operand.hbm [shape: f32[128,512], index: 9, kind: input, shape index: {}]
  %s10 = inlined_call_operand.hbm [shape: f32[128,512], index: 10, kind: input, shape index: {}]
  %s11 = inlined_call_operand.vmem [shape: f32[1,512], index: 11, kind: input, shape index: {}]
  %s12 = inlined_call_operand.hbm [shape: f32[8,384], index: 12, kind: output, shape index: {0}]
  %s13 = inlined_call_operand.hbm [shape: f32[2,8,128], index: 13, kind: output, shape index: {1}, may-alias: {1,13}]
  %s14 = inlined_call_operand.hbm [shape: f32[2,8,128], index: 14, kind: output, shape index: {2}, may-alias: {2,14}]
  %15 = xla_tuple %s12, %s13, %s14
  %s16 = sld [smem:[#allocation0]]
  $region153: #{one_step_decoder_forward.1} parent=0
    _
  %s18 = ssub.s32 1, %s16
  %s19 = scalar_select 0, %s18, %s16
  %s21 = sshll.u32 %s0, 4
  %s22 = int_to_ptr.vmem [resolvable:$true] %s21
  %24 = dma.vmem_to_smem %s22, 16, [#allocation6], [#allocation5]
  %26 = dma.done [#allocation5], 16
  %27 = sfence
  $region1: #{one_step_decoder_forward.1} parent=0
    #allocation7 [shape = 'u8[8192]{0}', space=vmem, size = 0x2000, scoped, tag = 'input window, operand 1, single buffered']
    #allocation8 [shape = 's32[2]{0}', space=sflag, size = 0x8, scoped, tag = 'scoped memory for one_step_decoder_forward.1']
    #allocation9 [shape = 's32[2]{0}', space=sflag, size = 0x8, scoped, tag = 'scoped memory for one_step_decoder_forward.1']
    #allocation10 [shape = 'u8[8192]{0}', space=vmem, size = 0x2000, scoped, tag = 'input window, operand 2, single buffered']
    #allocation11 [shape = 's32[1]{0}', space=sflag, size = 0x4, scoped, tag = 'scoped memory for one_step_decoder_forward.1']
    #allocation12 [shape = 'u8[131072]{0}', space=vmem, size = 0x20000, scoped, tag = 'input window, operand 4']
    #allocation13 [shape = 'u8[262144]{0}', space=vmem, size = 0x40000, scoped, tag = 'input window, operand 6, single buffered']
    #allocation14 [shape = 'u8[262144]{0}', space=vmem, size = 0x40000, scoped, tag = 'input window, operand 7, single buffered']
    #allocation15 [shape = 's32[1]{0}', space=sflag, size = 0x4, scoped, tag = 'scoped memory for one_step_decoder_forward.1']
    #allocation16 [shape = 'u8[262144]{0}', space=vmem, size = 0x40000, scoped, tag = 'input window, operand 9, single buffered']
    #allocation17 [shape = 'u8[262144]{0}', space=vmem, size = 0x40000, scoped, tag = 'input window, operand 10, single buffered']
    #allocation18 [shape = 's32[1]{0}', space=sflag, size = 0x4, scoped, tag = 'scoped memory for one_step_decoder_forward.1']
    #allocation19 [shape = 'u8[8192]{0}', space=vmem, size = 0x2000, scoped, tag = 'output window, operand 0']
    #allocation20 [shape = 'u8[8192]{0}', space=vmem, size = 0x2000, scoped, tag = 'output window, operand 1, single buffered']
    #allocation21 [shape = 's32[1]{0}', space=sflag, size = 0x4, scoped, tag = 'scoped memory for one_step_decoder_forward.1']
    #allocation22 [shape = 'u8[8192]{0}', space=vmem, size = 0x2000, scoped, tag = 'output window, operand 2, single buffered']
    %28 = vsyncpa [#allocation8], 0
    %29 = vsyncpa [#allocation11], 0
    %30 = vsyncpa [#allocation15], 0
    %31 = vsyncpa [#allocation18], 0
    %32 = vsyncpa [#allocation9], 0
    %s33 = scalar_lea.sflag [#allocation9], 1
    %34 = vsyncpa %s33, 0
    %35 = vsyncpa [#allocation21], 0
    loop: start=0, step=1, limit=5
    $region2: #{one_step_decoder_forward.1} parent=1 // loop_pre_header
      _
    $region3: #{one_step_decoder_forward.1} parent=1 // loop_header
      %s37 = sphi 0, %s41
      %p38 = scmp.ge.s32.totalorder %s37, 5
      %s45 = sphi 0, %s45
      %s47 = sphi 0, %s45
      %s48 = sphi 0, %s47
      %s62 = sphi 0, %s48
      %s66 = sphi 0, %s66
      %s68 = sphi 0, %s66
      %s69 = sphi 0, %s68
      %s83 = sphi 0, %s69
      %s89 = sphi 0, %s91
      %s92 = sphi 0, %s89
      %s93 = sphi 0, %s92
      %s109 = sphi 0, %s93
      %s115 = sphi 0, %s117
      %s118 = sphi 0, %s115
      %s119 = sphi 0, %s118
      %s135 = sphi 0, %s119
      %s139 = sphi 0, %s139
      %s141 = sphi 0, %s139
      %s142 = sphi 0, %s141
      %s156 = sphi 0, %s142
      %s160 = sphi 0, %s160
      %s162 = sphi 0, %s160
      %s163 = sphi 0, %s162
      %s177 = sphi 0, %s163
      %s181 = sphi 0, %s181
      %s183 = sphi 0, %s181
      %s184 = sphi 0, %s183
      %s198 = sphi 0, %s184
      %s202 = sphi 0, %s202
      %s204 = sphi 0, %s202
      %s205 = sphi 0, %s204
      %s219 = sphi 0, %s205
      %s223 = sphi 0, %s223
      %s225 = sphi 0, %s223
      %s226 = sphi 0, %s225
      %s240 = sphi 0, %s226
      %s244 = sphi 0, %s244
      %s246 = sphi 0, %s244
      %s247 = sphi 0, %s246
      %s261 = sphi 0, %s247
      %s267 = sphi 0, %s269
      %s270 = sphi 0, %s267
      %s271 = sphi 0, %s270
      %s287 = sphi 0, %s271
      %s291 = sphi 0, %s291
      %s293 = sphi 0, %s291
      %s294 = sphi 0, %s293
      %s308 = sphi 0, %s294
      %s312 = sphi 0, %s312
      %s314 = sphi 0, %s312
      %s315 = sphi 0, %s314
      %s329 = sphi 0, %s315
    $region4: #{one_step_decoder_forward.1} parent=1 // loop_header_branch
      %40 = sbr.rel (%p38) target = $region8
    $region5: #{one_step_decoder_forward.1} parent=1 // loop_body
      %s42 = ssub.s32 %s37, 1
      %s43 = ssub.s32 %s37, 2
      %s44 = sadd.s32 %s37, 1
      %s46 = sadd.s32 %s45, 1
      %p49 = scmp.eq.s32.totalorder %s37, 2
      %p50 = scmp.ne.s32.totalorder %s45, %s47
      %p51 = scmp.eq.s32.totalorder %s37, 0
      %p52 = por %p50, %p51
      %p53 = scmp.ne.s32.totalorder %s45, %s47
      %p54 = scmp.eq.s32.totalorder %s42, 2
      %p55 = por %p53, %p54
      %p56 = scmp.ne.s32.totalorder %s47, %s48
      %p57 = scmp.eq.s32.totalorder %s42, 0
      %p58 = por %p56, %p57
      %p59 = scmp.ne.s32.totalorder %s47, %s48
      %p60 = scmp.eq.s32.totalorder %s43, 2
      %p61 = por %p59, %p60
      %p63 = scmp.ne.s32.totalorder %s48, %s62
      %p64 = scmp.eq.s32.totalorder %s43, 0
      %p65 = por %p63, %p64
      %s67 = sadd.s32 %s66, 1
      %p70 = scmp.eq.s32.totalorder %s37, 2
      %p71 = scmp.ne.s32.totalorder %s66, %s68
      %p72 = scmp.eq.s32.totalorder %s37, 0
      %p73 = por %p71, %p72
      %p74 = scmp.ne.s32.totalorder %s66, %s68
      %p75 = scmp.eq.s32.totalorder %s42, 2
      %p76 = por %p74, %p75
      %p77 = scmp.ne.s32.totalorder %s68, %s69
      %p78 = scmp.eq.s32.totalorder %s42, 0
      %p79 = por %p77, %p78
      %p80 = scmp.ne.s32.totalorder %s68, %s69
      %p81 = scmp.eq.s32.totalorder %s43, 2
      %p82 = por %p80, %p81
      %p84 = scmp.ne.s32.totalorder %s69, %s83
      %p85 = scmp.eq.s32.totalorder %s43, 0
      %p86 = por %p84, %p85
      %s87 = ssub.s32 %s37, %s44
      %p88 = scmp.eq.s32.totalorder %s87, 0
      %s90 = sadd.s32 %s89, 1
      %s91 = scalar_select %p88, %s89, %s90
      %p94 = pneg %p88
      %p95 = scmp.eq.s32.totalorder %s37, 2
      %p96 = por %p94, %p95
      %p97 = scmp.ne.s32.totalorder %s89, %s92
      %p98 = scmp.eq.s32.totalorder %s37, 0
      %p99 = por %p97, %p98
      %p100 = scmp.ne.s32.totalorder %s89, %s92
      %p101 = scmp.eq.s32.totalorder %s42, 2
      %p102 = por %p100, %p101
      %p103 = scmp.ne.s32.totalorder %s92, %s93
      %p104 = scmp.eq.s32.totalorder %s42, 0
      %p105 = por %p103, %p104
      %p106 = scmp.ne.s32.totalorder %s92, %s93
      %p107 = scmp.eq.s32.totalorder %s43, 2
      %p108 = por %p106, %p107
      %p110 = scmp.ne.s32.totalorder %s93, %s109
      %p111 = scmp.eq.s32.totalorder %s43, 0
      %p112 = por %p110, %p111
      %s113 = ssub.s32 %s37, %s44
      %p114 = scmp.eq.s32.totalorder %s113, 0
      %s116 = sadd.s32 %s115, 1
      %s117 = scalar_select %p114, %s115, %s116
      %p120 = pneg %p114
      %p121 = scmp.eq.s32.totalorder %s37, 2
      %p122 = por %p120, %p121
      %p123 = scmp.ne.s32.totalorder %s115, %s118
      %p124 = scmp.eq.s32.totalorder %s37, 0
      %p125 = por %p123, %p124
      %p126 = scmp.ne.s32.totalorder %s115, %s118
      %p127 = scmp.eq.s32.totalorder %s42, 2
      %p128 = por %p126, %p127
      %p129 = scmp.ne.s32.totalorder %s118, %s119
      %p130 = scmp.eq.s32.totalorder %s42, 0
      %p131 = por %p129, %p130
      %p132 = scmp.ne.s32.totalorder %s118, %s119
      %p133 = scmp.eq.s32.totalorder %s43, 2
      %p134 = por %p132, %p133
      %p136 = scmp.ne.s32.totalorder %s119, %s135
      %p137 = scmp.eq.s32.totalorder %s43, 0
      %p138 = por %p136, %p137
      %s140 = sadd.s32 %s139, 1
      %p143 = scmp.eq.s32.totalorder %s37, 2
      %p144 = scmp.ne.s32.totalorder %s139, %s141
      %p145 = scmp.eq.s32.totalorder %s37, 0
      %p146 = por %p144, %p145
      %p147 = scmp.ne.s32.totalorder %s139, %s141
      %p148 = scmp.eq.s32.totalorder %s42, 2
      %p149 = por %p147, %p148
      %p150 = scmp.ne.s32.totalorder %s141, %s142
      %p151 = scmp.eq.s32.totalorder %s42, 0
      %p152 = por %p150, %p151
      %p153 = scmp.ne.s32.totalorder %s141, %s142
      %p154 = scmp.eq.s32.totalorder %s43, 2
      %p155 = por %p153, %p154
      %p157 = scmp.ne.s32.totalorder %s142, %s156
      %p158 = scmp.eq.s32.totalorder %s43, 0
      %p159 = por %p157, %p158
      %s161 = sadd.s32 %s160, 1
      %p164 = scmp.eq.s32.totalorder %s37, 2
      %p165 = scmp.ne.s32.totalorder %s160, %s162
      %p166 = scmp.eq.s32.totalorder %s37, 0
      %p167 = por %p165, %p166
      %p168 = scmp.ne.s32.totalorder %s160, %s162
      %p169 = scmp.eq.s32.totalorder %s42, 2
      %p170 = por %p168, %p169
      %p171 = scmp.ne.s32.totalorder %s162, %s163
      %p172 = scmp.eq.s32.totalorder %s42, 0
      %p173 = por %p171, %p172
      %p174 = scmp.ne.s32.totalorder %s162, %s163
      %p175 = scmp.eq.s32.totalorder %s43, 2
      %p176 = por %p174, %p175
      %p178 = scmp.ne.s32.totalorder %s163, %s177
      %p179 = scmp.eq.s32.totalorder %s43, 0
      %p180 = por %p178, %p179
      %s182 = sadd.s32 %s181, 1
      %p185 = scmp.eq.s32.totalorder %s37, 2
      %p186 = scmp.ne.s32.totalorder %s181, %s183
      %p187 = scmp.eq.s32.totalorder %s37, 0
      %p188 = por %p186, %p187
      %p189 = scmp.ne.s32.totalorder %s181, %s183
      %p190 = scmp.eq.s32.totalorder %s42, 2
      %p191 = por %p189, %p190
      %p192 = scmp.ne.s32.totalorder %s183, %s184
      %p193 = scmp.eq.s32.totalorder %s42, 0
      %p194 = por %p192, %p193
      %p195 = scmp.ne.s32.totalorder %s183, %s184
      %p196 = scmp.eq.s32.totalorder %s43, 2
      %p197 = por %p195, %p196
      %p199 = scmp.ne.s32.totalorder %s184, %s198
      %p200 = scmp.eq.s32.totalorder %s43, 0
      %p201 = por %p199, %p200
      %s203 = sadd.s32 %s202, 1
      %p206 = scmp.eq.s32.totalorder %s37, 2
      %p207 = scmp.ne.s32.totalorder %s202, %s204
      %p208 = scmp.eq.s32.totalorder %s37, 0
      %p209 = por %p207, %p208
      %p210 = scmp.ne.s32.totalorder %s202, %s204
      %p211 = scmp.eq.s32.totalorder %s42, 2
      %p212 = por %p210, %p211
      %p213 = scmp.ne.s32.totalorder %s204, %s205
      %p214 = scmp.eq.s32.totalorder %s42, 0
      %p215 = por %p213, %p214
      %p216 = scmp.ne.s32.totalorder %s204, %s205
      %p217 = scmp.eq.s32.totalorder %s43, 2
      %p218 = por %p216, %p217
      %p220 = scmp.ne.s32.totalorder %s205, %s219
      %p221 = scmp.eq.s32.totalorder %s43, 0
      %p222 = por %p220, %p221
      %s224 = sadd.s32 %s223, 1
      %p227 = scmp.eq.s32.totalorder %s37, 2
      %p228 = scmp.ne.s32.totalorder %s223, %s225
      %p229 = scmp.eq.s32.totalorder %s37, 0
      %p230 = por %p228, %p229
      %p231 = scmp.ne.s32.totalorder %s223, %s225
      %p232 = scmp.eq.s32.totalorder %s42, 2
      %p233 = por %p231, %p232
      %p234 = scmp.ne.s32.totalorder %s225, %s226
      %p235 = scmp.eq.s32.totalorder %s42, 0
      %p236 = por %p234, %p235
      %p237 = scmp.ne.s32.totalorder %s225, %s226
      %p238 = scmp.eq.s32.totalorder %s43, 2
      %p239 = por %p237, %p238
      %p241 = scmp.ne.s32.totalorder %s226, %s240
      %p242 = scmp.eq.s32.totalorder %s43, 0
      %p243 = por %p241, %p242
      %s245 = sadd.s32 %s244, 1
      %p248 = scmp.eq.s32.totalorder %s37, 2
      %p249 = scmp.ne.s32.totalorder %s244, %s246
      %p250 = scmp.eq.s32.totalorder %s37, 0
      %p251 = por %p249, %p250
      %p252 = scmp.ne.s32.totalorder %s244, %s246
      %p253 = scmp.eq.s32.totalorder %s42, 2
      %p254 = por %p252, %p253
      %p255 = scmp.ne.s32.totalorder %s246, %s247
      %p256 = scmp.eq.s32.totalorder %s42, 0
      %p257 = por %p255, %p256
      %p258 = scmp.ne.s32.totalorder %s246, %s247
      %p259 = scmp.eq.s32.totalorder %s43, 2
      %p260 = por %p258, %p259
      %p262 = scmp.ne.s32.totalorder %s247, %s261
      %p263 = scmp.eq.s32.totalorder %s43, 0
      %p264 = por %p262, %p263
      %s265 = ssub.s32 %s37, %s44
      %p266 = scmp.eq.s32.totalorder %s265, 0
      %s268 = sadd.s32 %s267, 1
      %s269 = scalar_select %p266, %s267, %s268
      %p272 = pneg %p266
      %p273 = scmp.eq.s32.totalorder %s37, 2
      %p274 = por %p272, %p273
      %p275 = scmp.ne.s32.totalorder %s267, %s270
      %p276 = scmp.eq.s32.totalorder %s37, 0
      %p277 = por %p275, %p276
      %p278 = scmp.ne.s32.totalorder %s267, %s270
      %p279 = scmp.eq.s32.totalorder %s42, 2
      %p280 = por %p278, %p279
      %p281 = scmp.ne.s32.totalorder %s270, %s271
      %p282 = scmp.eq.s32.totalorder %s42, 0
      %p283 = por %p281, %p282
      %p284 = scmp.ne.s32.totalorder %s270, %s271
      %p285 = scmp.eq.s32.totalorder %s43, 2
      %p286 = por %p284, %p285
      %p288 = scmp.ne.s32.totalorder %s271, %s287
      %p289 = scmp.eq.s32.totalorder %s43, 0
      %p290 = por %p288, %p289
      %s292 = sadd.s32 %s291, 1
      %p295 = scmp.eq.s32.totalorder %s37, 2
      %p296 = scmp.ne.s32.totalorder %s291, %s293
      %p297 = scmp.eq.s32.totalorder %s37, 0
      %p298 = por %p296, %p297
      %p299 = scmp.ne.s32.totalorder %s291, %s293
      %p300 = scmp.eq.s32.totalorder %s42, 2
      %p301 = por %p299, %p300
      %p302 = scmp.ne.s32.totalorder %s293, %s294
      %p303 = scmp.eq.s32.totalorder %s42, 0
      %p304 = por %p302, %p303
      %p305 = scmp.ne.s32.totalorder %s293, %s294
      %p306 = scmp.eq.s32.totalorder %s43, 2
      %p307 = por %p305, %p306
      %p309 = scmp.ne.s32.totalorder %s294, %s308
      %p310 = scmp.eq.s32.totalorder %s43, 0
      %p311 = por %p309, %p310
      %s313 = sadd.s32 %s312, 1
      %p316 = scmp.eq.s32.totalorder %s37, 2
      %p317 = scmp.ne.s32.totalorder %s312, %s314
      %p318 = scmp.eq.s32.totalorder %s37, 0
      %p319 = por %p317, %p318
      %p320 = scmp.ne.s32.totalorder %s312, %s314
      %p321 = scmp.eq.s32.totalorder %s42, 2
      %p322 = por %p320, %p321
      %p323 = scmp.ne.s32.totalorder %s314, %s315
      %p324 = scmp.eq.s32.totalorder %s42, 0
      %p325 = por %p323, %p324
      %p326 = scmp.ne.s32.totalorder %s314, %s315
      %p327 = scmp.eq.s32.totalorder %s43, 2
      %p328 = por %p326, %p327
      %p330 = scmp.ne.s32.totalorder %s315, %s329
      %p331 = scmp.eq.s32.totalorder %s43, 0
      %p332 = por %p330, %p331
      %p333 = scmp.le.s32.totalorder 1, %s37
      %p334 = scmp.lt.s32.totalorder %s37, 4
      %p335 = pnand %p333, %p334
      %p336 = pneg %p335
      // Predicated region
      $region9: #{one_step_decoder_forward.1} parent=5 // pred_check
        _
      $region10: #{one_step_decoder_forward.1} parent=5 // pred_check_branch
        %338 = sbr.rel (%p335) target = $region12
      $region11: #{one_step_decoder_forward.1} parent=5 // pred_region
        %s339 = ssub.s32 %s37, 1
        // Predicated region
        $region13: #{one_step_decoder_forward.1} parent=11 // pred_check
          %p340 = pneg %p58
        $region14: #{one_step_decoder_forward.1} parent=11 // pred_check_branch
          %342 = sbr.rel (%p340) target = $region16
        $region15: #{one_step_decoder_forward.1} parent=11 // pred_region
          %344 = vsyncadd [#allocation8], 0
          %s345 = sshll.u32 %s1, 4
          %s346 = int_to_ptr.hbm [resolvable:$true] %s345
          %s347 = sshll.u32 [#allocation7], 4
          %s348 = int_to_ptr.vmem [resolvable:$true] %s347
          %353 = dma.hbm_to_vmem [thread:$0]  %s346, 256, %s348, [#allocation8], 128, 128, 8
        $region16: #{one_step_decoder_forward.1} parent=11 // pred_fallthru
          _
        // Predicated region
        $region17: #{one_step_decoder_forward.1} parent=11 // pred_check
          %p354 = pneg %p79
        $region18: #{one_step_decoder_forward.1} parent=11 // pred_check_branch
          %356 = sbr.rel (%p354) target = $region20
        $region19: #{one_step_decoder_forward.1} parent=11 // pred_region
          %358 = vsyncadd [#allocation11], 0
          %s359 = sshll.u32 %s2, 4
          %s360 = int_to_ptr.hbm [resolvable:$true] %s359
          %s361 = sshll.u32 [#allocation10], 4
          %s362 = int_to_ptr.vmem [resolvable:$true] %s361
          %367 = dma.hbm_to_vmem [thread:$0]  %s360, 256, %s362, [#allocation11], 128, 128, 8
        $region20: #{one_step_decoder_forward.1} parent=11 // pred_fallthru
          _
        // Predicated region
        $region21: #{one_step_decoder_forward.1} parent=11 // pred_check
          %p368 = pneg %p152
        $region22: #{one_step_decoder_forward.1} parent=11 // pred_check_branch
          %370 = sbr.rel (%p368) target = $region24
        $region23: #{one_step_decoder_forward.1} parent=11 // pred_region
          %372 = vsyncadd [#allocation11], 0
          %s373 = sshll.u32 %s6, 4
          %s374 = int_to_ptr.hbm [resolvable:$true] %s373
          %s375 = sshll.u32 [#allocation13], 4
          %s376 = int_to_ptr.vmem [resolvable:$true] %s375
          %381 = dma.hbm_to_vmem [thread:$0]  %s374, 8192, %s376, [#allocation11], 512, 512, 32
        $region24: #{one_step_decoder_forward.1} parent=11 // pred_fallthru
          _
        // Predicated region
        $region25: #{one_step_decoder_forward.1} parent=11 // pred_check
          %p382 = pneg %p173
        $region26: #{one_step_decoder_forward.1} parent=11 // pred_check_branch
          %384 = sbr.rel (%p382) target = $region28
        $region27: #{one_step_decoder_forward.1} parent=11 // pred_region
          %386 = vsyncadd [#allocation15], 0
          %s387 = sshll.u32 %s7, 4
          %s388 = int_to_ptr.hbm [resolvable:$true] %s387
          %s389 = sshll.u32 [#allocation14], 4
          %s390 = int_to_ptr.vmem [resolvable:$true] %s389
          %395 = dma.hbm_to_vmem [thread:$0]  %s388, 8192, %s390, [#allocation15], 512, 512, 32
        $region28: #{one_step_decoder_forward.1} parent=11 // pred_fallthru
          _
        // Predicated region
        $region29: #{one_step_decoder_forward.1} parent=11 // pred_check
          %p396 = pneg %p194
        $region30: #{one_step_decoder_forward.1} parent=11 // pred_check_branch
          %398 = sbr.rel (%p396) target = $region32
        $region31: #{one_step_decoder_forward.1} parent=11 // pred_region
          _
        $region32: #{one_step_decoder_forward.1} parent=11 // pred_fallthru
          _
        // Predicated region
        $region33: #{one_step_decoder_forward.1} parent=11 // pred_check
          %p399 = pneg %p215
        $region34: #{one_step_decoder_forward.1} parent=11 // pred_check_branch
          %401 = sbr.rel (%p399) target = $region36
        $region35: #{one_step_decoder_forward.1} parent=11 // pred_region
          %403 = vsyncadd [#allocation15], 0
          %s404 = sshll.u32 %s9, 4
          %s405 = int_to_ptr.hbm [resolvable:$true] %s404
          %s406 = sshll.u32 [#allocation16], 4
          %s407 = int_to_ptr.vmem [resolvable:$true] %s406
          %412 = dma.hbm_to_vmem [thread:$0]  %s405, 8192, %s407, [#allocation15], 512, 512, 32
        $region36: #{one_step_decoder_forward.1} parent=11 // pred_fallthru
          _
        // Predicated region
        $region37: #{one_step_decoder_forward.1} parent=11 // pred_check
          %p413 = pneg %p236
        $region38: #{one_step_decoder_forward.1} parent=11 // pred_check_branch
          %415 = sbr.rel (%p413) target = $region40
        $region39: #{one_step_decoder_forward.1} parent=11 // pred_region
          %417 = vsyncadd [#allocation18], 0
          %s418 = sshll.u32 %s10, 4
          %s419 = int_to_ptr.hbm [resolvable:$true] %s418
          %s420 = sshll.u32 [#allocation17], 4
          %s421 = int_to_ptr.vmem [resolvable:$true] %s420
          %426 = dma.hbm_to_vmem [thread:$0]  %s419, 8192, %s421, [#allocation18], 512, 512, 32
        $region40: #{one_step_decoder_forward.1} parent=11 // pred_fallthru
          _
        // Predicated region
        $region41: #{one_step_decoder_forward.1} parent=11 // pred_check
          %p427 = pneg %p257
        $region42: #{one_step_decoder_forward.1} parent=11 // pred_check_branch
          %429 = sbr.rel (%p427) target = $region44
        $region43: #{one_step_decoder_forward.1} parent=11 // pred_region
          _
        $region44: #{one_step_decoder_forward.1} parent=11 // pred_fallthru
          _
      $region12: #{one_step_decoder_forward.1} parent=5 // pred_fallthru
        _
      %p430 = scmp.lt.s32.totalorder %s37, 3
      // Predicated region
      $region45: #{one_step_decoder_forward.1} parent=5 // pred_check
        %p431 = pneg %p430
      $region46: #{one_step_decoder_forward.1} parent=5 // pred_check_branch
        %433 = sbr.rel (%p431) target = $region48
      $region47: #{one_step_decoder_forward.1} parent=5 // pred_region
        // Predicated region
        $region49: #{one_step_decoder_forward.1} parent=47 // pred_check
          %p434 = pneg %p99
        $region50: #{one_step_decoder_forward.1} parent=47 // pred_check_branch
          %436 = sbr.rel (%p434) target = $region52
        $region51: #{one_step_decoder_forward.1} parent=47 // pred_region
          %s437 = sand.u32 %s37, 1
          %s438 = scalar_lea.sflag [#allocation8], %s437
          %s439 = sand.u32 %s89, 1
          %s440 = smul.addr %s439, 128
          %s441 = scalar_lea.vmem [#allocation12], %s440
          %443 = vsyncadd %s438, 0
          %s444 = smul.addr %s37, 8
          %s445 = scalar_lea.hbm %s4, %s444
          %s446 = sshll.u32 %s445, 4
          %s447 = int_to_ptr.hbm [resolvable:$true] %s446
          %s448 = sshll.u32 %s441, 4
          %s449 = int_to_ptr.vmem [resolvable:$true] %s448
          %454 = dma.hbm_to_vmem [thread:$0]  %s447, 2048, %s449, %s438, 384, 128, 8
        $region52: #{one_step_decoder_forward.1} parent=47 // pred_fallthru
          _
        // Predicated region
        $region53: #{one_step_decoder_forward.1} parent=47 // pred_check
          %p455 = pneg %p125
        $region54: #{one_step_decoder_forward.1} parent=47 // pred_check_branch
          %457 = sbr.rel (%p455) target = $region56
        $region55: #{one_step_decoder_forward.1} parent=47 // pred_region
          %p458 = scmp.lt.s32.totalorder %s37, 2
          %s459 = scalar_select %p458, %s37, 2
          %s460 = scalar_lea.vmem %s5, %s459
        $region56: #{one_step_decoder_forward.1} parent=47 // pred_fallthru
          _
      $region48: #{one_step_decoder_forward.1} parent=5 // pred_fallthru
        _
      %p461 = scmp.le.s32.totalorder 1, %s37
      %p462 = scmp.lt.s32.totalorder %s37, 4
      %p463 = pnand %p461, %p462
      %p464 = pneg %p463
      // Predicated region
      $region57: #{one_step_decoder_forward.1} parent=5 // pred_check
        _
      $region58: #{one_step_decoder_forward.1} parent=5 // pred_check_branch
        %466 = sbr.rel (%p463) target = $region60
      $region59: #{one_step_decoder_forward.1} parent=5 // pred_region
        %s467 = ssub.s32 %s37, 1
        // Predicated region
        $region61: #{one_step_decoder_forward.1} parent=59 // pred_check
          %p468 = pneg %p58
        $region62: #{one_step_decoder_forward.1} parent=59 // pred_check_branch
          %470 = sbr.rel (%p468) target = $region64
        $region63: #{one_step_decoder_forward.1} parent=59 // pred_region
          %472 = dma.done [#allocation8], 256
        $region64: #{one_step_decoder_forward.1} parent=59 // pred_fallthru
          _
        // Predicated region
        $region65: #{one_step_decoder_forward.1} parent=59 // pred_check
          %p473 = pneg %p79
        $region66: #{one_step_decoder_forward.1} parent=59 // pred_check_branch
          %475 = sbr.rel (%p473) target = $region68
        $region67: #{one_step_decoder_forward.1} parent=59 // pred_region
          %477 = dma.done [#allocation11], 256
        $region68: #{one_step_decoder_forward.1} parent=59 // pred_fallthru
          _
        %s478 = sand.u32 %s42, 1
        %s479 = scalar_lea.sflag [#allocation8], %s478
        %s480 = sand.u32 %s92, 1
        %s481 = smul.addr %s480, 128
        %s482 = scalar_lea.vmem [#allocation12], %s481
        // Predicated region
        $region69: #{one_step_decoder_forward.1} parent=59 // pred_check
          %p483 = pneg %p105
        $region70: #{one_step_decoder_forward.1} parent=59 // pred_check_branch
          %485 = sbr.rel (%p483) target = $region72
        $region71: #{one_step_decoder_forward.1} parent=59 // pred_region
          %487 = dma.done %s479, 2048
        $region72: #{one_step_decoder_forward.1} parent=59 // pred_fallthru
          _
        // Predicated region
        $region73: #{one_step_decoder_forward.1} parent=59 // pred_check
          %p488 = pneg %p152
        $region74: #{one_step_decoder_forward.1} parent=59 // pred_check_branch
          %490 = sbr.rel (%p488) target = $region76
        $region75: #{one_step_decoder_forward.1} parent=59 // pred_region
          %492 = dma.done [#allocation11], 8192
        $region76: #{one_step_decoder_forward.1} parent=59 // pred_fallthru
          _
        // Predicated region
        $region77: #{one_step_decoder_forward.1} parent=59 // pred_check
          %p493 = pneg %p173
        $region78: #{one_step_decoder_forward.1} parent=59 // pred_check_branch
          %495 = sbr.rel (%p493) target = $region80
        $region79: #{one_step_decoder_forward.1} parent=59 // pred_region
          %497 = dma.done [#allocation15], 8192
        $region80: #{one_step_decoder_forward.1} parent=59 // pred_fallthru
          _
        // Predicated region
        $region81: #{one_step_decoder_forward.1} parent=59 // pred_check
          %p498 = pneg %p215
        $region82: #{one_step_decoder_forward.1} parent=59 // pred_check_branch
          %500 = sbr.rel (%p498) target = $region84
        $region83: #{one_step_decoder_forward.1} parent=59 // pred_region
          %502 = dma.done [#allocation15], 8192
        $region84: #{one_step_decoder_forward.1} parent=59 // pred_fallthru
          _
        // Predicated region
        $region85: #{one_step_decoder_forward.1} parent=59 // pred_check
          %p503 = pneg %p236
        $region86: #{one_step_decoder_forward.1} parent=59 // pred_check_branch
          %505 = sbr.rel (%p503) target = $region88
        $region87: #{one_step_decoder_forward.1} parent=59 // pred_region
          %507 = dma.done [#allocation18], 8192
        $region88: #{one_step_decoder_forward.1} parent=59 // pred_fallthru
          _
        %p508 = pneg %p58
        %p509 = pneg %p55
        %p510 = pneg %p79
        %p511 = pneg %p76
        %s512 = sand.u32 %s42, 1
        %s513 = scalar_lea.sflag [#allocation8], %s512
        %s514 = sand.u32 %s92, 1
        %s515 = smul.addr %s514, 128
        %s516 = scalar_lea.vmem [#allocation12], %s515
        %p517 = pneg %p105
        %p518 = pneg %p102
        %p519 = scmp.lt.s32.totalorder %s42, 2
        %s520 = scalar_select %p519, %s42, 2
        %s521 = scalar_lea.vmem %s5, %s520
        %p522 = pneg %p131
        %p523 = pneg %p128
        %p524 = pneg %p152
        %p525 = pneg %p149
        %p526 = pneg %p173
        %p527 = pneg %p170
        %p528 = pneg %p194
        %p529 = pneg %p191
        %p530 = pneg %p215
        %p531 = pneg %p212
        %p532 = pneg %p236
        %p533 = pneg %p233
        %p534 = pneg %p257
        %p535 = pneg %p254
        %p536 = pneg %p283
        %p537 = pneg %p280
        %s538 = sand.u32 %s270, 1
        %s539 = scalar_lea.sflag [#allocation9], %s538
        %s540 = sand.u32 %s270, 1
        %s541 = smul.addr %s540, 8
        %s542 = scalar_lea.vmem [#allocation19], %s541
        %p543 = pneg %p304
        %p544 = pneg %p301
        %p545 = pneg %p325
        %p546 = pneg %p322
        %p547 = scmp.lt.s32.totalorder %s42, 2
        %s548 = scalar_select %p547, %s42, 2
        %s549 = scalar_lea.vmem %s5, %s548
        %p550 = scmp.eq.s32.totalorder %s42, 0
        // Predicated region
        $region89: #{one_step_decoder_forward.1} parent=59 // pred_check
          %p551 = pneg %p550
        $region90: #{one_step_decoder_forward.1} parent=59 // pred_check_branch
          %553 = sbr.rel (%p551) target = $region92
        $region91: #{one_step_decoder_forward.1} parent=59 // pred_region
          %s554 = sld [smem:[#allocation6]]
          %s555 = scalar_lea.hbm %s3, %s554
          // Predicated region
          $region93: #{one_step_decoder_forward.1} parent=91 // pred_check
            _
          $region94: #{one_step_decoder_forward.1} parent=91 // pred_check_branch
            %557 = sbr.rel target = $region96
          $region95: #{one_step_decoder_forward.1} parent=91 // pred_region
            %558 = sst [smem:[#allocation25]] [#allocation24]
            %559 = sst [smem:[#allocation26]] [#allocation23]
          $region96: #{one_step_decoder_forward.1} parent=91 // pred_fallthru
            _
          %561 = shalt.err (0)
          %s563 = sshll.u32 %s555, 4
          %s564 = int_to_ptr.hbm [resolvable:$true] %s563
          %s565 = sshll.u32 [#allocation2], 4
          %s566 = int_to_ptr.vmem [resolvable:$true] %s565
          %568 = dma.hbm_to_vmem [thread:$0]  %s564, 16, %s566, [#allocation4]
          %s569 = sld [smem:[#allocation6 + $0x1]]
          %s570 = scalar_lea.hbm %s3, %s569
          %s571 = scalar_lea.vmem [#allocation2], 1
          %s572 = scalar_lea.sflag [#allocation4], 1
          // Predicated region
          $region97: #{one_step_decoder_forward.1} parent=91 // pred_check
            _
          $region98: #{one_step_decoder_forward.1} parent=91 // pred_check_branch
            %574 = sbr.rel target = $region100
          $region99: #{one_step_decoder_forward.1} parent=91 // pred_region
            %575 = sst [smem:[#allocation25]] [#allocation28]
            %576 = sst [smem:[#allocation26]] [#allocation27]
          $region100: #{one_step_decoder_forward.1} parent=91 // pred_fallthru
            _
          %578 = shalt.err (0)
          %s580 = sshll.u32 %s570, 4
          %s581 = int_to_ptr.hbm [resolvable:$true] %s580
          %s582 = sshll.u32 %s571, 4
          %s583 = int_to_ptr.vmem [resolvable:$true] %s582
          %585 = dma.hbm_to_vmem [thread:$0]  %s581, 16, %s583, %s572
          %s586 = sld [smem:[#allocation6 + $0x2]]
          %s587 = scalar_lea.hbm %s3, %s586
          %s588 = scalar_lea.vmem [#allocation2], 2
          %s589 = scalar_lea.sflag [#allocation4], 2
          // Predicated region
          $region101: #{one_step_decoder_forward.1} parent=91 // pred_check
            _
          $region102: #{one_step_decoder_forward.1} parent=91 // pred_check_branch
            %591 = sbr.rel target = $region104
          $region103: #{one_step_decoder_forward.1} parent=91 // pred_region
            %592 = sst [smem:[#allocation25]] [#allocation30]
            %593 = sst [smem:[#allocation26]] [#allocation29]
          $region104: #{one_step_decoder_forward.1} parent=91 // pred_fallthru
            _
          %595 = shalt.err (0)
          %s597 = sshll.u32 %s587, 4
          %s598 = int_to_ptr.hbm [resolvable:$true] %s597
          %s599 = sshll.u32 %s588, 4
          %s600 = int_to_ptr.vmem [resolvable:$true] %s599
          %602 = dma.hbm_to_vmem [thread:$0]  %s598, 16, %s600, %s589
          %s603 = sld [smem:[#allocation6 + $0x3]]
          %s604 = scalar_lea.hbm %s3, %s603
          %s605 = scalar_lea.vmem [#allocation2], 3
          %s606 = scalar_lea.sflag [#allocation4], 3
          // Predicated region
          $region105: #{one_step_decoder_forward.1} parent=91 // pred_check
            _
          $region106: #{one_step_decoder_forward.1} parent=91 // pred_check_branch
            %608 = sbr.rel target = $region108
          $region107: #{one_step_decoder_forward.1} parent=91 // pred_region
            %609 = sst [smem:[#allocation25]] [#allocation32]
            %610 = sst [smem:[#allocation26]] [#allocation31]
          $region108: #{one_step_decoder_forward.1} parent=91 // pred_fallthru
            _
          %612 = shalt.err (0)
          %s614 = sshll.u32 %s604, 4
          %s615 = int_to_ptr.hbm [resolvable:$true] %s614
          %s616 = sshll.u32 %s605, 4
          %s617 = int_to_ptr.vmem [resolvable:$true] %s616
          %619 = dma.hbm_to_vmem [thread:$0]  %s615, 16, %s617, %s606
          %s620 = sld [smem:[#allocation6 + $0x4]]
          %s621 = scalar_lea.hbm %s3, %s620
          %s622 = scalar_lea.vmem [#allocation2], 4
          %s623 = scalar_lea.sflag [#allocation4], 4
          // Predicated region
          $region109: #{one_step_decoder_forward.1} parent=91 // pred_check
            _
          $region110: #{one_step_decoder_forward.1} parent=91 // pred_check_branch
            %625 = sbr.rel target = $region112
          $region111: #{one_step_decoder_forward.1} parent=91 // pred_region
            %626 = sst [smem:[#allocation25]] [#allocation34]
            %627 = sst [smem:[#allocation26]] [#allocation33]
          $region112: #{one_step_decoder_forward.1} parent=91 // pred_fallthru
            _
          %629 = shalt.err (0)
          %s631 = sshll.u32 %s621, 4
          %s632 = int_to_ptr.hbm [resolvable:$true] %s631
          %s633 = sshll.u32 %s622, 4
          %s634 = int_to_ptr.vmem [resolvable:$true] %s633
          %636 = dma.hbm_to_vmem [thread:$0]  %s632, 16, %s634, %s623
          %s637 = sld [smem:[#allocation6 + $0x5]]
          %s638 = scalar_lea.hbm %s3, %s637
          %s639 = scalar_lea.vmem [#allocation2], 5
          %s640 = scalar_lea.sflag [#allocation4], 5
          // Predicated region
          $region113: #{one_step_decoder_forward.1} parent=91 // pred_check
            _
          $region114: #{one_step_decoder_forward.1} parent=91 // pred_check_branch
            %642 = sbr.rel target = $region116
          $region115: #{one_step_decoder_forward.1} parent=91 // pred_region
            %643 = sst [smem:[#allocation25]] [#allocation36]
            %644 = sst [smem:[#allocation26]] [#allocation35]
          $region116: #{one_step_decoder_forward.1} parent=91 // pred_fallthru
            _
          %646 = shalt.err (0)
          %s648 = sshll.u32 %s638, 4
          %s649 = int_to_ptr.hbm [resolvable:$true] %s648
          %s650 = sshll.u32 %s639, 4
          %s651 = int_to_ptr.vmem [resolvable:$true] %s650
          %653 = dma.hbm_to_vmem [thread:$0]  %s649, 16, %s651, %s640
          %s654 = sld [smem:[#allocation6 + $0x6]]
          %s655 = scalar_lea.hbm %s3, %s654
          %s656 = scalar_lea.vmem [#allocation2], 6
          %s657 = scalar_lea.sflag [#allocation4], 6
          // Predicated region
          $region117: #{one_step_decoder_forward.1} parent=91 // pred_check
            _
          $region118: #{one_step_decoder_forward.1} parent=91 // pred_check_branch
            %659 = sbr.rel target = $region120
          $region119: #{one_step_decoder_forward.1} parent=91 // pred_region
            %660 = sst [smem:[#allocation25]] [#allocation38]
            %661 = sst [smem:[#allocation26]] [#allocation37]
          $region120: #{one_step_decoder_forward.1} parent=91 // pred_fallthru
            _
          %663 = shalt.err (0)
          %s665 = sshll.u32 %s655, 4
          %s666 = int_to_ptr.hbm [resolvable:$true] %s665
          %s667 = sshll.u32 %s656, 4
          %s668 = int_to_ptr.vmem [resolvable:$true] %s667
          %670 = dma.hbm_to_vmem [thread:$0]  %s666, 16, %s668, %s657
          %s671 = sld [smem:[#allocation6 + $0x7]]
          %s672 = scalar_lea.hbm %s3, %s671
          %s673 = scalar_lea.vmem [#allocation2], 7
          %s674 = scalar_lea.sflag [#allocation4], 7
          // Predicated region
          $region121: #{one_step_decoder_forward.1} parent=91 // pred_check
            _
          $region122: #{one_step_decoder_forward.1} parent=91 // pred_check_branch
            %676 = sbr.rel target = $region124
          $region123: #{one_step_decoder_forward.1} parent=91 // pred_region
            %677 = sst [smem:[#allocation25]] [#allocation40]
            %678 = sst [smem:[#allocation26]] [#allocation39]
          $region124: #{one_step_decoder_forward.1} parent=91 // pred_fallthru
            _
          %680 = shalt.err (0)
          %s682 = sshll.u32 %s672, 4
          %s683 = int_to_ptr.hbm [resolvable:$true] %s682
          %s684 = sshll.u32 %s673, 4
          %s685 = int_to_ptr.vmem [resolvable:$true] %s684
          %687 = dma.hbm_to_vmem [thread:$0]  %s683, 16, %s685, %s674
          %s688 = smul.u32 1, 1
          %s689 = sshll.u32 %s688, 4
          %690 = dma.done [#allocation4], %s689
          %s691 = sshll.u32 %s688, 4
          %692 = dma.done %s572, %s691
          %s693 = sshll.u32 %s688, 4
          %694 = dma.done %s589, %s693
          %s695 = sshll.u32 %s688, 4
          %696 = dma.done %s606, %s695
          %s697 = sshll.u32 %s688, 4
          %698 = dma.done %s623, %s697
          %s699 = sshll.u32 %s688, 4
          %700 = dma.done %s640, %s699
          %s701 = sshll.u32 %s688, 4
          %702 = dma.done %s657, %s701
          %s703 = sshll.u32 %s688, 4
          %704 = dma.done %s674, %s703
          %v705 = vld [vmem:[#allocation2] sm:$0xff]
          %v706 = vld [vmem:[#allocation13] sm:$0xff]
          %v707 = vld [vmem:[#allocation13 + $0x8] sm:$0xff]
          %v708 = vld [vmem:[#allocation13 + $0x10] sm:$0xff]
          %v709 = vld [vmem:[#allocation13 + $0x18] sm:$0xff]
          %v710 = vld [vmem:[#allocation13 + $0x20] sm:$0xff]
          %v711 = vld [vmem:[#allocation13 + $0x28] sm:$0xff]
          %v712 = vld [vmem:[#allocation13 + $0x30] sm:$0xff]
          %v713 = vld [vmem:[#allocation13 + $0x38] sm:$0xff]
          %v714 = vld [vmem:[#allocation13 + $0x40] sm:$0xff]
          %v715 = vld [vmem:[#allocation13 + $0x48] sm:$0xff]
          %v716 = vld [vmem:[#allocation13 + $0x50] sm:$0xff]
          %v717 = vld [vmem:[#allocation13 + $0x58] sm:$0xff]
          %v718 = vld [vmem:[#allocation13 + $0x60] sm:$0xff]
          %v719 = vld [vmem:[#allocation13 + $0x68] sm:$0xff]
          %v720 = vld [vmem:[#allocation13 + $0x70] sm:$0xff]
          %v721 = vld [vmem:[#allocation13 + $0x78] sm:$0xff]
          %v722 = vld [vmem:[#allocation13 + $0x80] sm:$0xff]
          %v723 = vld [vmem:[#allocation13 + $0x88] sm:$0xff]
          %v724 = vld [vmem:[#allocation13 + $0x90] sm:$0xff]
          %v725 = vld [vmem:[#allocation13 + $0x98] sm:$0xff]
          %v726 = vld [vmem:[#allocation13 + $0xa0] sm:$0xff]
          %v727 = vld [vmem:[#allocation13 + $0xa8] sm:$0xff]
          %v728 = vld [vmem:[#allocation13 + $0xb0] sm:$0xff]
          %v729 = vld [vmem:[#allocation13 + $0xb8] sm:$0xff]
          %v730 = vld [vmem:[#allocation13 + $0xc0] sm:$0xff]
          %v731 = vld [vmem:[#allocation13 + $0xc8] sm:$0xff]
          %v732 = vld [vmem:[#allocation13 + $0xd0] sm:$0xff]
          %v733 = vld [vmem:[#allocation13 + $0xd8] sm:$0xff]
          %v734 = vld [vmem:[#allocation13 + $0xe0] sm:$0xff]
          %v735 = vld [vmem:[#allocation13 + $0xe8] sm:$0xff]
          %v736 = vld [vmem:[#allocation13 + $0xf0] sm:$0xff]
          %v737 = vld [vmem:[#allocation13 + $0xf8] sm:$0xff]
          %v738 = vld [vmem:[#allocation13 + $0x100] sm:$0xff]
          %v739 = vld [vmem:[#allocation13 + $0x108] sm:$0xff]
          %v740 = vld [vmem:[#allocation13 + $0x110] sm:$0xff]
          %v741 = vld [vmem:[#allocation13 + $0x118] sm:$0xff]
          %v742 = vld [vmem:[#allocation13 + $0x120] sm:$0xff]
          %v743 = vld [vmem:[#allocation13 + $0x128] sm:$0xff]
          %v744 = vld [vmem:[#allocation13 + $0x130] sm:$0xff]
          %v745 = vld [vmem:[#allocation13 + $0x138] sm:$0xff]
          %v746 = vld [vmem:[#allocation13 + $0x140] sm:$0xff]
          %v747 = vld [vmem:[#allocation13 + $0x148] sm:$0xff]
          %v748 = vld [vmem:[#allocation13 + $0x150] sm:$0xff]
          %v749 = vld [vmem:[#allocation13 + $0x158] sm:$0xff]
          %v750 = vld [vmem:[#allocation13 + $0x160] sm:$0xff]
          %v751 = vld [vmem:[#allocation13 + $0x168] sm:$0xff]
          %v752 = vld [vmem:[#allocation13 + $0x170] sm:$0xff]
          %v753 = vld [vmem:[#allocation13 + $0x178] sm:$0xff]
          %v754 = vld [vmem:[#allocation13 + $0x180] sm:$0xff]
          %v755 = vld [vmem:[#allocation13 + $0x188] sm:$0xff]
          %v756 = vld [vmem:[#allocation13 + $0x190] sm:$0xff]
          %v757 = vld [vmem:[#allocation13 + $0x198] sm:$0xff]
          %v758 = vld [vmem:[#allocation13 + $0x1a0] sm:$0xff]
          %v759 = vld [vmem:[#allocation13 + $0x1a8] sm:$0xff]
          %v760 = vld [vmem:[#allocation13 + $0x1b0] sm:$0xff]
          %v761 = vld [vmem:[#allocation13 + $0x1b8] sm:$0xff]
          %v762 = vld [vmem:[#allocation13 + $0x1c0] sm:$0xff]
          %v763 = vld [vmem:[#allocation13 + $0x1c8] sm:$0xff]
          %v764 = vld [vmem:[#allocation13 + $0x1d0] sm:$0xff]
          %v765 = vld [vmem:[#allocation13 + $0x1d8] sm:$0xff]
          %v766 = vld [vmem:[#allocation13 + $0x1e0] sm:$0xff]
          %v767 = vld [vmem:[#allocation13 + $0x1e8] sm:$0xff]
          %v768 = vld [vmem:[#allocation13 + $0x1f0] sm:$0xff]
          %v769 = vld [vmem:[#allocation13 + $0x1f8] sm:$0xff]
          %v770 = vld [vmem:[#allocation14] sm:$0xff]
          %v771 = vld [vmem:[#allocation14 + $0x8] sm:$0xff]
          %v772 = vld [vmem:[#allocation14 + $0x10] sm:$0xff]
          %v773 = vld [vmem:[#allocation14 + $0x18] sm:$0xff]
          %v774 = vld [vmem:[#allocation14 + $0x20] sm:$0xff]
          %v775 = vld [vmem:[#allocation14 + $0x28] sm:$0xff]
          %v776 = vld [vmem:[#allocation14 + $0x30] sm:$0xff]
          %v777 = vld [vmem:[#allocation14 + $0x38] sm:$0xff]
          %v778 = vld [vmem:[#allocation14 + $0x40] sm:$0xff]
          %v779 = vld [vmem:[#allocation14 + $0x48] sm:$0xff]
          %v780 = vld [vmem:[#allocation14 + $0x50] sm:$0xff]
          %v781 = vld [vmem:[#allocation14 + $0x58] sm:$0xff]
          %v782 = vld [vmem:[#allocation14 + $0x60] sm:$0xff]
          %v783 = vld [vmem:[#allocation14 + $0x68] sm:$0xff]
          %v784 = vld [vmem:[#allocation14 + $0x70] sm:$0xff]
          %v785 = vld [vmem:[#allocation14 + $0x78] sm:$0xff]
          %v786 = vld [vmem:[#allocation14 + $0x80] sm:$0xff]
          %v787 = vld [vmem:[#allocation14 + $0x88] sm:$0xff]
          %v788 = vld [vmem:[#allocation14 + $0x90] sm:$0xff]
          %v789 = vld [vmem:[#allocation14 + $0x98] sm:$0xff]
          %v790 = vld [vmem:[#allocation14 + $0xa0] sm:$0xff]
          %v791 = vld [vmem:[#allocation14 + $0xa8] sm:$0xff]
          %v792 = vld [vmem:[#allocation14 + $0xb0] sm:$0xff]
          %v793 = vld [vmem:[#allocation14 + $0xb8] sm:$0xff]
          %v794 = vld [vmem:[#allocation14 + $0xc0] sm:$0xff]
          %v795 = vld [vmem:[#allocation14 + $0xc8] sm:$0xff]
          %v796 = vld [vmem:[#allocation14 + $0xd0] sm:$0xff]
          %v797 = vld [vmem:[#allocation14 + $0xd8] sm:$0xff]
          %v798 = vld [vmem:[#allocation14 + $0xe0] sm:$0xff]
          %v799 = vld [vmem:[#allocation14 + $0xe8] sm:$0xff]
          %v800 = vld [vmem:[#allocation14 + $0xf0] sm:$0xff]
          %v801 = vld [vmem:[#allocation14 + $0xf8] sm:$0xff]
          %v802 = vld [vmem:[#allocation14 + $0x100] sm:$0xff]
          %v803 = vld [vmem:[#allocation14 + $0x108] sm:$0xff]
          %v804 = vld [vmem:[#allocation14 + $0x110] sm:$0xff]
          %v805 = vld [vmem:[#allocation14 + $0x118] sm:$0xff]
          %v806 = vld [vmem:[#allocation14 + $0x120] sm:$0xff]
          %v807 = vld [vmem:[#allocation14 + $0x128] sm:$0xff]
          %v808 = vld [vmem:[#allocation14 + $0x130] sm:$0xff]
          %v809 = vld [vmem:[#allocation14 + $0x138] sm:$0xff]
          %v810 = vld [vmem:[#allocation14 + $0x140] sm:$0xff]
          %v811 = vld [vmem:[#allocation14 + $0x148] sm:$0xff]
          %v812 = vld [vmem:[#allocation14 + $0x150] sm:$0xff]
          %v813 = vld [vmem:[#allocation14 + $0x158] sm:$0xff]
          %v814 = vld [vmem:[#allocation14 + $0x160] sm:$0xff]
          %v815 = vld [vmem:[#allocation14 + $0x168] sm:$0xff]
          %v816 = vld [vmem:[#allocation14 + $0x170] sm:$0xff]
          %v817 = vld [vmem:[#allocation14 + $0x178] sm:$0xff]
          %v818 = vld [vmem:[#allocation14 + $0x180] sm:$0xff]
          %v819 = vld [vmem:[#allocation14 + $0x188] sm:$0xff]
          %v820 = vld [vmem:[#allocation14 + $0x190] sm:$0xff]
          %v821 = vld [vmem:[#allocation14 + $0x198] sm:$0xff]
          %v822 = vld [vmem:[#allocation14 + $0x1a0] sm:$0xff]
          %v823 = vld [vmem:[#allocation14 + $0x1a8] sm:$0xff]
          %v824 = vld [vmem:[#allocation14 + $0x1b0] sm:$0xff]
          %v825 = vld [vmem:[#allocation14 + $0x1b8] sm:$0xff]
          %v826 = vld [vmem:[#allocation14 + $0x1c0] sm:$0xff]
          %v827 = vld [vmem:[#allocation14 + $0x1c8] sm:$0xff]
          %v828 = vld [vmem:[#allocation14 + $0x1d0] sm:$0xff]
          %v829 = vld [vmem:[#allocation14 + $0x1d8] sm:$0xff]
          %v830 = vld [vmem:[#allocation14 + $0x1e0] sm:$0xff]
          %v831 = vld [vmem:[#allocation14 + $0x1e8] sm:$0xff]
          %v832 = vld [vmem:[#allocation14 + $0x1f0] sm:$0xff]
          %v833 = vld [vmem:[#allocation14 + $0x1f8] sm:$0xff]
          %v834 = vld [vmem:[%s8] sm:$0xf]
          %v835 = vld [vmem:[#allocation7] sm:$0xff]
          %v836 = vld [vmem:[#allocation10] sm:$0xff]
          %837 = vmatpush.msra.mxu0 %v830
          %838 = vmatpush.msra.mxu0 %v826
          %839 = vmatpush.msra.mxu0 %v822
          %840 = vmatpush.msra.mxu0 %v818
          %841 = vmatpush.msra.mxu0 %v814
          %842 = vmatpush.msra.mxu0 %v810
          %843 = vmatpush.msra.mxu0 %v806
          %844 = vmatpush.msra.mxu0 %v802
          %845 = vmatpush.msra.mxu0 %v798
          %846 = vmatpush.msra.mxu0 %v794
          %847 = vmatpush.msra.mxu0 %v790
          %848 = vmatpush.msra.mxu0 %v786
          %849 = vmatpush.msra.mxu0 %v782
          %850 = vmatpush.msra.mxu0 %v778
          %851 = vmatpush.msra.mxu0 %v774
          %852 = vmatpush.msra.mxu0 %v770
          %853 = vmatmul.f32.gmra.mxu0 %v835
          %v854 = vpop.f32.mrf.mxu0
          %v855 = vadd.f32 0.0, %v854
          %856 = vdwg.mxu0
          %857 = vmatpush.msra.mxu0 %v831
          %858 = vmatpush.msra.mxu0 %v827
          %859 = vmatpush.msra.mxu0 %v823
          %860 = vmatpush.msra.mxu0 %v819
          %861 = vmatpush.msra.mxu0 %v815
          %862 = vmatpush.msra.mxu0 %v811
          %863 = vmatpush.msra.mxu0 %v807
          %864 = vmatpush.msra.mxu0 %v803
          %865 = vmatpush.msra.mxu0 %v799
          %866 = vmatpush.msra.mxu0 %v795
          %867 = vmatpush.msra.mxu0 %v791
          %868 = vmatpush.msra.mxu0 %v787
          %869 = vmatpush.msra.mxu0 %v783
          %870 = vmatpush.msra.mxu0 %v779
          %871 = vmatpush.msra.mxu0 %v775
          %872 = vmatpush.msra.mxu0 %v771
          %873 = vmatmul.f32.gmra.mxu0 %v835
          %v874 = vpop.f32.mrf.mxu0
          %v875 = vadd.f32 0.0, %v874
          %876 = vdwg.mxu0
          %877 = vmatpush.msra.mxu0 %v832
          %878 = vmatpush.msra.mxu0 %v828
          %879 = vmatpush.msra.mxu0 %v824
          %880 = vmatpush.msra.mxu0 %v820
          %881 = vmatpush.msra.mxu0 %v816
          %882 = vmatpush.msra.mxu0 %v812
          %883 = vmatpush.msra.mxu0 %v808
          %884 = vmatpush.msra.mxu0 %v804
          %885 = vmatpush.msra.mxu0 %v800
          %886 = vmatpush.msra.mxu0 %v796
          %887 = vmatpush.msra.mxu0 %v792
          %888 = vmatpush.msra.mxu0 %v788
          %889 = vmatpush.msra.mxu0 %v784
          %890 = vmatpush.msra.mxu0 %v780
          %891 = vmatpush.msra.mxu0 %v776
          %892 = vmatpush.msra.mxu0 %v772
          %893 = vmatmul.f32.gmra.mxu0 %v835
          %v894 = vpop.f32.mrf.mxu0
          %v895 = vadd.f32 0.0, %v894
          %896 = vdwg.mxu0
          %897 = vmatpush.msra.mxu0 %v833
          %898 = vmatpush.msra.mxu0 %v829
          %899 = vmatpush.msra.mxu0 %v825
          %900 = vmatpush.msra.mxu0 %v821
          %901 = vmatpush.msra.mxu0 %v817
          %902 = vmatpush.msra.mxu0 %v813
          %903 = vmatpush.msra.mxu0 %v809
          %904 = vmatpush.msra.mxu0 %v805
          %905 = vmatpush.msra.mxu0 %v801
          %906 = vmatpush.msra.mxu0 %v797
          %907 = vmatpush.msra.mxu0 %v793
          %908 = vmatpush.msra.mxu0 %v789
          %909 = vmatpush.msra.mxu0 %v785
          %910 = vmatpush.msra.mxu0 %v781
          %911 = vmatpush.msra.mxu0 %v777
          %912 = vmatpush.msra.mxu0 %v773
          %913 = vmatmul.f32.gmra.mxu0 %v835
          %v914 = vpop.f32.mrf.mxu0
          %v915 = vadd.f32 0.0, %v914
          %916 = vdwg.mxu0
          %917 = vmatpush.msra.mxu0 %v766
          %918 = vmatpush.msra.mxu0 %v762
          %919 = vmatpush.msra.mxu0 %v758
          %920 = vmatpush.msra.mxu0 %v754
          %921 = vmatpush.msra.mxu0 %v750
          %922 = vmatpush.msra.mxu0 %v746
          %923 = vmatpush.msra.mxu0 %v742
          %924 = vmatpush.msra.mxu0 %v738
          %925 = vmatpush.msra.mxu0 %v734
          %926 = vmatpush.msra.mxu0 %v730
          %927 = vmatpush.msra.mxu0 %v726
          %928 = vmatpush.msra.mxu0 %v722
          %929 = vmatpush.msra.mxu0 %v718
          %930 = vmatpush.msra.mxu0 %v714
          %931 = vmatpush.msra.mxu0 %v710
          %932 = vmatpush.msra.mxu0 %v706
          %933 = vmatmul.f32.gmra.mxu0 %v705
          %v934 = vpop.f32.mrf.mxu0
          %v935 = vadd.f32 %v855, %v934
          %936 = vdwg.mxu0
          %937 = vmatpush.msra.mxu0 %v767
          %938 = vmatpush.msra.mxu0 %v763
          %939 = vmatpush.msra.mxu0 %v759
          %940 = vmatpush.msra.mxu0 %v755
          %941 = vmatpush.msra.mxu0 %v751
          %942 = vmatpush.msra.mxu0 %v747
          %943 = vmatpush.msra.mxu0 %v743
          %944 = vmatpush.msra.mxu0 %v739
          %945 = vmatpush.msra.mxu0 %v735
          %946 = vmatpush.msra.mxu0 %v731
          %947 = vmatpush.msra.mxu0 %v727
          %948 = vmatpush.msra.mxu0 %v723
          %949 = vmatpush.msra.mxu0 %v719
          %950 = vmatpush.msra.mxu0 %v715
          %951 = vmatpush.msra.mxu0 %v711
          %952 = vmatpush.msra.mxu0 %v707
          %953 = vmatmul.f32.gmra.mxu0 %v705
          %v954 = vpop.f32.mrf.mxu0
          %v955 = vadd.f32 %v875, %v954
          %956 = vdwg.mxu0
          %957 = vmatpush.msra.mxu0 %v768
          %958 = vmatpush.msra.mxu0 %v764
          %959 = vmatpush.msra.mxu0 %v760
          %960 = vmatpush.msra.mxu0 %v756
          %961 = vmatpush.msra.mxu0 %v752
          %962 = vmatpush.msra.mxu0 %v748
          %963 = vmatpush.msra.mxu0 %v744
          %964 = vmatpush.msra.mxu0 %v740
          %965 = vmatpush.msra.mxu0 %v736
          %966 = vmatpush.msra.mxu0 %v732
          %967 = vmatpush.msra.mxu0 %v728
          %968 = vmatpush.msra.mxu0 %v724
          %969 = vmatpush.msra.mxu0 %v720
          %970 = vmatpush.msra.mxu0 %v716
          %971 = vmatpush.msra.mxu0 %v712
          %972 = vmatpush.msra.mxu0 %v708
          %973 = vmatmul.f32.gmra.mxu0 %v705
          %v974 = vpop.f32.mrf.mxu0
          %v975 = vadd.f32 %v895, %v974
          %976 = vdwg.mxu0
          %977 = vmatpush.msra.mxu0 %v769
          %978 = vmatpush.msra.mxu0 %v765
          %979 = vmatpush.msra.mxu0 %v761
          %980 = vmatpush.msra.mxu0 %v757
          %981 = vmatpush.msra.mxu0 %v753
          %982 = vmatpush.msra.mxu0 %v749
          %983 = vmatpush.msra.mxu0 %v745
          %984 = vmatpush.msra.mxu0 %v741
          %985 = vmatpush.msra.mxu0 %v737
          %986 = vmatpush.msra.mxu0 %v733
          %987 = vmatpush.msra.mxu0 %v729
          %988 = vmatpush.msra.mxu0 %v725
          %989 = vmatpush.msra.mxu0 %v721
          %990 = vmatpush.msra.mxu0 %v717
          %991 = vmatpush.msra.mxu0 %v713
          %992 = vmatpush.msra.mxu0 %v709
          %993 = vmatmul.f32.gmra.mxu0 %v705
          %v994 = vpop.f32.mrf.mxu0
          %v995 = vadd.f32 %v915, %v994
          %996 = vdwg.mxu0
          %v998 = vperm.slane %v834, 0
          %v999 = vperm.slane %v834, 1
          %v1000 = vperm.slane %v834, 2
          %v1001 = vperm.slane %v834, 3
          %v1006 = vadd.f32 %v935, %v998
          %v1007 = vadd.f32 %v955, %v999
          %v1008 = vadd.f32 %v975, %v1000
          %v1009 = vadd.f32 %v995, %v1001
          %v1010 = vxor.u32 %v1006, 2147483648
          %v1011 = vmul.f32 %v1010, 1.442695
          %v1012 = vpow.pop %v1011
          %v1013 = vadd.f32 %v1012, 1.0
          %v1014 = vrcp.pop %v1013
          %v1015 = vmul.f32 %v1013, %v1014
          %v1016 = vsub.f32 1.0, %v1015
          %v1017 = vmul.f32 %v1014, %v1016
          %v1018 = vadd.f32 %v1014, %v1017
          %vm1019 = vweird.f32 %v1013
          %vm1020 = vweird.f32 %v1014
          %vm1021 = vmor %vm1019, %vm1020
          %v1022 = vsel %vm1021, %v1014, %v1018
          %v1023 = vand.u32 2147483647, %v1013
          %vm1024 = vcmp.eq.f32.partialorder %v1023, 8.507059e+37
          %v1025 = vand.u32 %v1013, 2147483648
          %v1026 = vor.u32 1.1754944e-38, %v1025
          %v1027 = vsel %vm1024, %v1026, %v1022
          %v1028 = vmul.f32 1.0, %v1027
          %v1029 = vxor.u32 %v1007, 2147483648
          %v1030 = vmul.f32 %v1029, 1.442695
          %v1031 = vpow.pop %v1030
          %v1032 = vadd.f32 %v1031, 1.0
          %v1033 = vrcp.pop %v1032
          %v1034 = vmul.f32 %v1032, %v1033
          %v1035 = vsub.f32 1.0, %v1034
          %v1036 = vmul.f32 %v1033, %v1035
          %v1037 = vadd.f32 %v1033, %v1036
          %vm1038 = vweird.f32 %v1032
          %vm1039 = vweird.f32 %v1033
          %vm1040 = vmor %vm1038, %vm1039
          %v1041 = vsel %vm1040, %v1033, %v1037
          %v1042 = vand.u32 2147483647, %v1032
          %vm1043 = vcmp.eq.f32.partialorder %v1042, 8.507059e+37
          %v1044 = vand.u32 %v1032, 2147483648
          %v1045 = vor.u32 1.1754944e-38, %v1044
          %v1046 = vsel %vm1043, %v1045, %v1041
          %v1047 = vmul.f32 1.0, %v1046
          %v1048 = vtanh.pop %v1008
          %v1049 = vxor.u32 %v1009, 2147483648
          %v1050 = vmul.f32 %v1049, 1.442695
          %v1051 = vpow.pop %v1050
          %v1052 = vadd.f32 %v1051, 1.0
          %v1053 = vrcp.pop %v1052
          %v1054 = vmul.f32 %v1052, %v1053
          %v1055 = vsub.f32 1.0, %v1054
          %v1056 = vmul.f32 %v1053, %v1055
          %v1057 = vadd.f32 %v1053, %v1056
          %vm1058 = vweird.f32 %v1052
          %vm1059 = vweird.f32 %v1053
          %vm1060 = vmor %vm1058, %vm1059
          %v1061 = vsel %vm1060, %v1053, %v1057
          %v1062 = vand.u32 2147483647, %v1052
          %vm1063 = vcmp.eq.f32.partialorder %v1062, 8.507059e+37
          %v1064 = vand.u32 %v1052, 2147483648
          %v1065 = vor.u32 1.1754944e-38, %v1064
          %v1066 = vsel %vm1063, %v1065, %v1061
          %v1067 = vmul.f32 1.0, %v1066
          %v1068 = vmul.f32 %v1047, %v836
          %v1069 = vmul.f32 %v1028, %v1048
          %v1070 = vadd.f32 %v1068, %v1069
          %v1071 = vtanh.pop %v1070
          %v1072 = vmul.f32 %v1067, %v1071
          %1073 = vst [vmem:[#allocation20] sm:$0xff] %v1072
          %1074 = vst [vmem:[#allocation22] sm:$0xff] %v1070
          %v1075 = vld [vmem:[#allocation16] sm:$0xff]
          %v1076 = vld [vmem:[#allocation16 + $0x8] sm:$0xff]
          %v1077 = vld [vmem:[#allocation16 + $0x10] sm:$0xff]
          %v1078 = vld [vmem:[#allocation16 + $0x18] sm:$0xff]
          %v1079 = vld [vmem:[#allocation16 + $0x20] sm:$0xff]
          %v1080 = vld [vmem:[#allocation16 + $0x28] sm:$0xff]
          %v1081 = vld [vmem:[#allocation16 + $0x30] sm:$0xff]
          %v1082 = vld [vmem:[#allocation16 + $0x38] sm:$0xff]
          %v1083 = vld [vmem:[#allocation16 + $0x40] sm:$0xff]
          %v1084 = vld [vmem:[#allocation16 + $0x48] sm:$0xff]
          %v1085 = vld [vmem:[#allocation16 + $0x50] sm:$0xff]
          %v1086 = vld [vmem:[#allocation16 + $0x58] sm:$0xff]
          %v1087 = vld [vmem:[#allocation16 + $0x60] sm:$0xff]
          %v1088 = vld [vmem:[#allocation16 + $0x68] sm:$0xff]
          %v1089 = vld [vmem:[#allocation16 + $0x70] sm:$0xff]
          %v1090 = vld [vmem:[#allocation16 + $0x78] sm:$0xff]
          %v1091 = vld [vmem:[#allocation16 + $0x80] sm:$0xff]
          %v1092 = vld [vmem:[#allocation16 + $0x88] sm:$0xff]
          %v1093 = vld [vmem:[#allocation16 + $0x90] sm:$0xff]
          %v1094 = vld [vmem:[#allocation16 + $0x98] sm:$0xff]
          %v1095 = vld [vmem:[#allocation16 + $0xa0] sm:$0xff]
          %v1096 = vld [vmem:[#allocation16 + $0xa8] sm:$0xff]
          %v1097 = vld [vmem:[#allocation16 + $0xb0] sm:$0xff]
          %v1098 = vld [vmem:[#allocation16 + $0xb8] sm:$0xff]
          %v1099 = vld [vmem:[#allocation16 + $0xc0] sm:$0xff]
          %v1100 = vld [vmem:[#allocation16 + $0xc8] sm:$0xff]
          %v1101 = vld [vmem:[#allocation16 + $0xd0] sm:$0xff]
          %v1102 = vld [vmem:[#allocation16 + $0xd8] sm:$0xff]
          %v1103 = vld [vmem:[#allocation16 + $0xe0] sm:$0xff]
          %v1104 = vld [vmem:[#allocation16 + $0xe8] sm:$0xff]
          %v1105 = vld [vmem:[#allocation16 + $0xf0] sm:$0xff]
          %v1106 = vld [vmem:[#allocation16 + $0xf8] sm:$0xff]
          %v1107 = vld [vmem:[#allocation16 + $0x100] sm:$0xff]
          %v1108 = vld [vmem:[#allocation16 + $0x108] sm:$0xff]
          %v1109 = vld [vmem:[#allocation16 + $0x110] sm:$0xff]
          %v1110 = vld [vmem:[#allocation16 + $0x118] sm:$0xff]
          %v1111 = vld [vmem:[#allocation16 + $0x120] sm:$0xff]
          %v1112 = vld [vmem:[#allocation16 + $0x128] sm:$0xff]
          %v1113 = vld [vmem:[#allocation16 + $0x130] sm:$0xff]
          %v1114 = vld [vmem:[#allocation16 + $0x138] sm:$0xff]
          %v1115 = vld [vmem:[#allocation16 + $0x140] sm:$0xff]
          %v1116 = vld [vmem:[#allocation16 + $0x148] sm:$0xff]
          %v1117 = vld [vmem:[#allocation16 + $0x150] sm:$0xff]
          %v1118 = vld [vmem:[#allocation16 + $0x158] sm:$0xff]
          %v1119 = vld [vmem:[#allocation16 + $0x160] sm:$0xff]
          %v1120 = vld [vmem:[#allocation16 + $0x168] sm:$0xff]
          %v1121 = vld [vmem:[#allocation16 + $0x170] sm:$0xff]
          %v1122 = vld [vmem:[#allocation16 + $0x178] sm:$0xff]
          %v1123 = vld [vmem:[#allocation16 + $0x180] sm:$0xff]
          %v1124 = vld [vmem:[#allocation16 + $0x188] sm:$0xff]
          %v1125 = vld [vmem:[#allocation16 + $0x190] sm:$0xff]
          %v1126 = vld [vmem:[#allocation16 + $0x198] sm:$0xff]
          %v1127 = vld [vmem:[#allocation16 + $0x1a0] sm:$0xff]
          %v1128 = vld [vmem:[#allocation16 + $0x1a8] sm:$0xff]
          %v1129 = vld [vmem:[#allocation16 + $0x1b0] sm:$0xff]
          %v1130 = vld [vmem:[#allocation16 + $0x1b8] sm:$0xff]
          %v1131 = vld [vmem:[#allocation16 + $0x1c0] sm:$0xff]
          %v1132 = vld [vmem:[#allocation16 + $0x1c8] sm:$0xff]
          %v1133 = vld [vmem:[#allocation16 + $0x1d0] sm:$0xff]
          %v1134 = vld [vmem:[#allocation16 + $0x1d8] sm:$0xff]
          %v1135 = vld [vmem:[#allocation16 + $0x1e0] sm:$0xff]
          %v1136 = vld [vmem:[#allocation16 + $0x1e8] sm:$0xff]
          %v1137 = vld [vmem:[#allocation16 + $0x1f0] sm:$0xff]
          %v1138 = vld [vmem:[#allocation16 + $0x1f8] sm:$0xff]
          %v1139 = vld [vmem:[#allocation17] sm:$0xff]
          %v1140 = vld [vmem:[#allocation17 + $0x8] sm:$0xff]
          %v1141 = vld [vmem:[#allocation17 + $0x10] sm:$0xff]
          %v1142 = vld [vmem:[#allocation17 + $0x18] sm:$0xff]
          %v1143 = vld [vmem:[#allocation17 + $0x20] sm:$0xff]
          %v1144 = vld [vmem:[#allocation17 + $0x28] sm:$0xff]
          %v1145 = vld [vmem:[#allocation17 + $0x30] sm:$0xff]
          %v1146 = vld [vmem:[#allocation17 + $0x38] sm:$0xff]
          %v1147 = vld [vmem:[#allocation17 + $0x40] sm:$0xff]
          %v1148 = vld [vmem:[#allocation17 + $0x48] sm:$0xff]
          %v1149 = vld [vmem:[#allocation17 + $0x50] sm:$0xff]
          %v1150 = vld [vmem:[#allocation17 + $0x58] sm:$0xff]
          %v1151 = vld [vmem:[#allocation17 + $0x60] sm:$0xff]
          %v1152 = vld [vmem:[#allocation17 + $0x68] sm:$0xff]
          %v1153 = vld [vmem:[#allocation17 + $0x70] sm:$0xff]
          %v1154 = vld [vmem:[#allocation17 + $0x78] sm:$0xff]
          %v1155 = vld [vmem:[#allocation17 + $0x80] sm:$0xff]
          %v1156 = vld [vmem:[#allocation17 + $0x88] sm:$0xff]
          %v1157 = vld [vmem:[#allocation17 + $0x90] sm:$0xff]
          %v1158 = vld [vmem:[#allocation17 + $0x98] sm:$0xff]
          %v1159 = vld [vmem:[#allocation17 + $0xa0] sm:$0xff]
          %v1160 = vld [vmem:[#allocation17 + $0xa8] sm:$0xff]
          %v1161 = vld [vmem:[#allocation17 + $0xb0] sm:$0xff]
          %v1162 = vld [vmem:[#allocation17 + $0xb8] sm:$0xff]
          %v1163 = vld [vmem:[#allocation17 + $0xc0] sm:$0xff]
          %v1164 = vld [vmem:[#allocation17 + $0xc8] sm:$0xff]
          %v1165 = vld [vmem:[#allocation17 + $0xd0] sm:$0xff]
          %v1166 = vld [vmem:[#allocation17 + $0xd8] sm:$0xff]
          %v1167 = vld [vmem:[#allocation17 + $0xe0] sm:$0xff]
          %v1168 = vld [vmem:[#allocation17 + $0xe8] sm:$0xff]
          %v1169 = vld [vmem:[#allocation17 + $0xf0] sm:$0xff]
          %v1170 = vld [vmem:[#allocation17 + $0xf8] sm:$0xff]
          %v1171 = vld [vmem:[#allocation17 + $0x100] sm:$0xff]
          %v1172 = vld [vmem:[#allocation17 + $0x108] sm:$0xff]
          %v1173 = vld [vmem:[#allocation17 + $0x110] sm:$0xff]
          %v1174 = vld [vmem:[#allocation17 + $0x118] sm:$0xff]
          %v1175 = vld [vmem:[#allocation17 + $0x120] sm:$0xff]
          %v1176 = vld [vmem:[#allocation17 + $0x128] sm:$0xff]
          %v1177 = vld [vmem:[#allocation17 + $0x130] sm:$0xff]
          %v1178 = vld [vmem:[#allocation17 + $0x138] sm:$0xff]
          %v1179 = vld [vmem:[#allocation17 + $0x140] sm:$0xff]
          %v1180 = vld [vmem:[#allocation17 + $0x148] sm:$0xff]
          %v1181 = vld [vmem:[#allocation17 + $0x150] sm:$0xff]
          %v1182 = vld [vmem:[#allocation17 + $0x158] sm:$0xff]
          %v1183 = vld [vmem:[#allocation17 + $0x160] sm:$0xff]
          %v1184 = vld [vmem:[#allocation17 + $0x168] sm:$0xff]
          %v1185 = vld [vmem:[#allocation17 + $0x170] sm:$0xff]
          %v1186 = vld [vmem:[#allocation17 + $0x178] sm:$0xff]
          %v1187 = vld [vmem:[#allocation17 + $0x180] sm:$0xff]
          %v1188 = vld [vmem:[#allocation17 + $0x188] sm:$0xff]
          %v1189 = vld [vmem:[#allocation17 + $0x190] sm:$0xff]
          %v1190 = vld [vmem:[#allocation17 + $0x198] sm:$0xff]
          %v1191 = vld [vmem:[#allocation17 + $0x1a0] sm:$0xff]
          %v1192 = vld [vmem:[#allocation17 + $0x1a8] sm:$0xff]
          %v1193 = vld [vmem:[#allocation17 + $0x1b0] sm:$0xff]
          %v1194 = vld [vmem:[#allocation17 + $0x1b8] sm:$0xff]
          %v1195 = vld [vmem:[#allocation17 + $0x1c0] sm:$0xff]
          %v1196 = vld [vmem:[#allocation17 + $0x1c8] sm:$0xff]
          %v1197 = vld [vmem:[#allocation17 + $0x1d0] sm:$0xff]
          %v1198 = vld [vmem:[#allocation17 + $0x1d8] sm:$0xff]
          %v1199 = vld [vmem:[#allocation17 + $0x1e0] sm:$0xff]
          %v1200 = vld [vmem:[#allocation17 + $0x1e8] sm:$0xff]
          %v1201 = vld [vmem:[#allocation17 + $0x1f0] sm:$0xff]
          %v1202 = vld [vmem:[#allocation17 + $0x1f8] sm:$0xff]
          %v1203 = vld [vmem:[%s11] sm:$0xf]
          %s1204 = scalar_lea.vmem [#allocation7], 8
          %v1205 = vld [vmem:[%s1204] sm:$0xff]
          %s1206 = scalar_lea.vmem [#allocation10], 8
          %v1207 = vld [vmem:[%s1206] sm:$0xff]
          %1208 = vmatpush.msra.mxu0 %v1199
          %1209 = vmatpush.msra.mxu0 %v1195
          %1210 = vmatpush.msra.mxu0 %v1191
          %1211 = vmatpush.msra.mxu0 %v1187
          %1212 = vmatpush.msra.mxu0 %v1183
          %1213 = vmatpush.msra.mxu0 %v1179
          %1214 = vmatpush.msra.mxu0 %v1175
          %1215 = vmatpush.msra.mxu0 %v1171
          %1216 = vmatpush.msra.mxu0 %v1167
          %1217 = vmatpush.msra.mxu0 %v1163
          %1218 = vmatpush.msra.mxu0 %v1159
          %1219 = vmatpush.msra.mxu0 %v1155
          %1220 = vmatpush.msra.mxu0 %v1151
          %1221 = vmatpush.msra.mxu0 %v1147
          %1222 = vmatpush.msra.mxu0 %v1143
          %1223 = vmatpush.msra.mxu0 %v1139
          %1224 = vmatmul.f32.gmra.mxu0 %v1205
          %v1225 = vpop.f32.mrf.mxu0
          %v1226 = vadd.f32 0.0, %v1225
          %1227 = vdwg.mxu0
          %1228 = vmatpush.msra.mxu0 %v1200
          %1229 = vmatpush.msra.mxu0 %v1196
          %1230 = vmatpush.msra.mxu0 %v1192
          %1231 = vmatpush.msra.mxu0 %v1188
          %1232 = vmatpush.msra.mxu0 %v1184
          %1233 = vmatpush.msra.mxu0 %v1180
          %1234 = vmatpush.msra.mxu0 %v1176
          %1235 = vmatpush.msra.mxu0 %v1172
          %1236 = vmatpush.msra.mxu0 %v1168
          %1237 = vmatpush.msra.mxu0 %v1164
          %1238 = vmatpush.msra.mxu0 %v1160
          %1239 = vmatpush.msra.mxu0 %v1156
          %1240 = vmatpush.msra.mxu0 %v1152
          %1241 = vmatpush.msra.mxu0 %v1148
          %1242 = vmatpush.msra.mxu0 %v1144
          %1243 = vmatpush.msra.mxu0 %v1140
          %1244 = vmatmul.f32.gmra.mxu0 %v1205
          %v1245 = vpop.f32.mrf.mxu0
          %v1246 = vadd.f32 0.0, %v1245
          %1247 = vdwg.mxu0
          %1248 = vmatpush.msra.mxu0 %v1201
          %1249 = vmatpush.msra.mxu0 %v1197
          %1250 = vmatpush.msra.mxu0 %v1193
          %1251 = vmatpush.msra.mxu0 %v1189
          %1252 = vmatpush.msra.mxu0 %v1185
          %1253 = vmatpush.msra.mxu0 %v1181
          %1254 = vmatpush.msra.mxu0 %v1177
          %1255 = vmatpush.msra.mxu0 %v1173
          %1256 = vmatpush.msra.mxu0 %v1169
          %1257 = vmatpush.msra.mxu0 %v1165
          %1258 = vmatpush.msra.mxu0 %v1161
          %1259 = vmatpush.msra.mxu0 %v1157
          %1260 = vmatpush.msra.mxu0 %v1153
          %1261 = vmatpush.msra.mxu0 %v1149
          %1262 = vmatpush.msra.mxu0 %v1145
          %1263 = vmatpush.msra.mxu0 %v1141
          %1264 = vmatmul.f32.gmra.mxu0 %v1205
          %v1265 = vpop.f32.mrf.mxu0
          %v1266 = vadd.f32 0.0, %v1265
          %1267 = vdwg.mxu0
          %1268 = vmatpush.msra.mxu0 %v1202
          %1269 = vmatpush.msra.mxu0 %v1198
          %1270 = vmatpush.msra.mxu0 %v1194
          %1271 = vmatpush.msra.mxu0 %v1190
          %1272 = vmatpush.msra.mxu0 %v1186
          %1273 = vmatpush.msra.mxu0 %v1182
          %1274 = vmatpush.msra.mxu0 %v1178
          %1275 = vmatpush.msra.mxu0 %v1174
          %1276 = vmatpush.msra.mxu0 %v1170
          %1277 = vmatpush.msra.mxu0 %v1166
          %1278 = vmatpush.msra.mxu0 %v1162
          %1279 = vmatpush.msra.mxu0 %v1158
          %1280 = vmatpush.msra.mxu0 %v1154
          %1281 = vmatpush.msra.mxu0 %v1150
          %1282 = vmatpush.msra.mxu0 %v1146
          %1283 = vmatpush.msra.mxu0 %v1142
          %1284 = vmatmul.f32.gmra.mxu0 %v1205
          %v1285 = vpop.f32.mrf.mxu0
          %v1286 = vadd.f32 0.0, %v1285
          %1287 = vdwg.mxu0
          %1288 = vmatpush.msra.mxu0 %v1135
          %1289 = vmatpush.msra.mxu0 %v1131
          %1290 = vmatpush.msra.mxu0 %v1127
          %1291 = vmatpush.msra.mxu0 %v1123
          %1292 = vmatpush.msra.mxu0 %v1119
          %1293 = vmatpush.msra.mxu0 %v1115
          %1294 = vmatpush.msra.mxu0 %v1111
          %1295 = vmatpush.msra.mxu0 %v1107
          %1296 = vmatpush.msra.mxu0 %v1103
          %1297 = vmatpush.msra.mxu0 %v1099
          %1298 = vmatpush.msra.mxu0 %v1095
          %1299 = vmatpush.msra.mxu0 %v1091
          %1300 = vmatpush.msra.mxu0 %v1087
          %1301 = vmatpush.msra.mxu0 %v1083
          %1302 = vmatpush.msra.mxu0 %v1079
          %1303 = vmatpush.msra.mxu0 %v1075
          %1304 = vmatmul.f32.gmra.mxu0 %v1072
          %v1305 = vpop.f32.mrf.mxu0
          %v1306 = vadd.f32 %v1226, %v1305
          %1307 = vdwg.mxu0
          %1308 = vmatpush.msra.mxu0 %v1136
          %1309 = vmatpush.msra.mxu0 %v1132
          %1310 = vmatpush.msra.mxu0 %v1128
          %1311 = vmatpush.msra.mxu0 %v1124
          %1312 = vmatpush.msra.mxu0 %v1120
          %1313 = vmatpush.msra.mxu0 %v1116
          %1314 = vmatpush.msra.mxu0 %v1112
          %1315 = vmatpush.msra.mxu0 %v1108
          %1316 = vmatpush.msra.mxu0 %v1104
          %1317 = vmatpush.msra.mxu0 %v1100
          %1318 = vmatpush.msra.mxu0 %v1096
          %1319 = vmatpush.msra.mxu0 %v1092
          %1320 = vmatpush.msra.mxu0 %v1088
          %1321 = vmatpush.msra.mxu0 %v1084
          %1322 = vmatpush.msra.mxu0 %v1080
          %1323 = vmatpush.msra.mxu0 %v1076
          %1324 = vmatmul.f32.gmra.mxu0 %v1072
          %v1325 = vpop.f32.mrf.mxu0
          %v1326 = vadd.f32 %v1246, %v1325
          %1327 = vdwg.mxu0
          %1328 = vmatpush.msra.mxu0 %v1137
          %1329 = vmatpush.msra.mxu0 %v1133
          %1330 = vmatpush.msra.mxu0 %v1129
          %1331 = vmatpush.msra.mxu0 %v1125
          %1332 = vmatpush.msra.mxu0 %v1121
          %1333 = vmatpush.msra.mxu0 %v1117
          %1334 = vmatpush.msra.mxu0 %v1113
          %1335 = vmatpush.msra.mxu0 %v1109
          %1336 = vmatpush.msra.mxu0 %v1105
          %1337 = vmatpush.msra.mxu0 %v1101
          %1338 = vmatpush.msra.mxu0 %v1097
          %1339 = vmatpush.msra.mxu0 %v1093
          %1340 = vmatpush.msra.mxu0 %v1089
          %1341 = vmatpush.msra.mxu0 %v1085
          %1342 = vmatpush.msra.mxu0 %v1081
          %1343 = vmatpush.msra.mxu0 %v1077
          %1344 = vmatmul.f32.gmra.mxu0 %v1072
          %v1345 = vpop.f32.mrf.mxu0
          %v1346 = vadd.f32 %v1266, %v1345
          %1347 = vdwg.mxu0
          %1348 = vmatpush.msra.mxu0 %v1138
          %1349 = vmatpush.msra.mxu0 %v1134
          %1350 = vmatpush.msra.mxu0 %v1130
          %1351 = vmatpush.msra.mxu0 %v1126
          %1352 = vmatpush.msra.mxu0 %v1122
          %1353 = vmatpush.msra.mxu0 %v1118
          %1354 = vmatpush.msra.mxu0 %v1114
          %1355 = vmatpush.msra.mxu0 %v1110
          %1356 = vmatpush.msra.mxu0 %v1106
          %1357 = vmatpush.msra.mxu0 %v1102
          %1358 = vmatpush.msra.mxu0 %v1098
          %1359 = vmatpush.msra.mxu0 %v1094
          %1360 = vmatpush.msra.mxu0 %v1090
          %1361 = vmatpush.msra.mxu0 %v1086
          %1362 = vmatpush.msra.mxu0 %v1082
          %1363 = vmatpush.msra.mxu0 %v1078
          %1364 = vmatmul.f32.gmra.mxu0 %v1072
          %v1365 = vpop.f32.mrf.mxu0
          %v1366 = vadd.f32 %v1286, %v1365
          %1367 = vdwg.mxu0
          %v1369 = vperm.slane %v1203, 0
          %v1370 = vperm.slane %v1203, 1
          %v1371 = vperm.slane %v1203, 2
          %v1372 = vperm.slane %v1203, 3
          %v1377 = vadd.f32 %v1306, %v1369
          %v1378 = vadd.f32 %v1326, %v1370
          %v1379 = vadd.f32 %v1346, %v1371
          %v1380 = vadd.f32 %v1366, %v1372
          %v1381 = vxor.u32 %v1377, 2147483648
          %v1382 = vmul.f32 %v1381, 1.442695
          %v1383 = vpow.pop %v1382
          %v1384 = vadd.f32 %v1383, 1.0
          %v1385 = vrcp.pop %v1384
          %v1386 = vmul.f32 %v1384, %v1385
          %v1387 = vsub.f32 1.0, %v1386
          %v1388 = vmul.f32 %v1385, %v1387
          %v1389 = vadd.f32 %v1385, %v1388
          %vm1390 = vweird.f32 %v1384
          %vm1391 = vweird.f32 %v1385
          %vm1392 = vmor %vm1390, %vm1391
          %v1393 = vsel %vm1392, %v1385, %v1389
          %v1394 = vand.u32 2147483647, %v1384
          %vm1395 = vcmp.eq.f32.partialorder %v1394, 8.507059e+37
          %v1396 = vand.u32 %v1384, 2147483648
          %v1397 = vor.u32 1.1754944e-38, %v1396
          %v1398 = vsel %vm1395, %v1397, %v1393
          %v1399 = vmul.f32 1.0, %v1398
          %v1400 = vxor.u32 %v1378, 2147483648
          %v1401 = vmul.f32 %v1400, 1.442695
          %v1402 = vpow.pop %v1401
          %v1403 = vadd.f32 %v1402, 1.0
          %v1404 = vrcp.pop %v1403
          %v1405 = vmul.f32 %v1403, %v1404
          %v1406 = vsub.f32 1.0, %v1405
          %v1407 = vmul.f32 %v1404, %v1406
          %v1408 = vadd.f32 %v1404, %v1407
          %vm1409 = vweird.f32 %v1403
          %vm1410 = vweird.f32 %v1404
          %vm1411 = vmor %vm1409, %vm1410
          %v1412 = vsel %vm1411, %v1404, %v1408
          %v1413 = vand.u32 2147483647, %v1403
          %vm1414 = vcmp.eq.f32.partialorder %v1413, 8.507059e+37
          %v1415 = vand.u32 %v1403, 2147483648
          %v1416 = vor.u32 1.1754944e-38, %v1415
          %v1417 = vsel %vm1414, %v1416, %v1412
          %v1418 = vmul.f32 1.0, %v1417
          %v1419 = vtanh.pop %v1379
          %v1420 = vxor.u32 %v1380, 2147483648
          %v1421 = vmul.f32 %v1420, 1.442695
          %v1422 = vpow.pop %v1421
          %v1423 = vadd.f32 %v1422, 1.0
          %v1424 = vrcp.pop %v1423
          %v1425 = vmul.f32 %v1423, %v1424
          %v1426 = vsub.f32 1.0, %v1425
          %v1427 = vmul.f32 %v1424, %v1426
          %v1428 = vadd.f32 %v1424, %v1427
          %vm1429 = vweird.f32 %v1423
          %vm1430 = vweird.f32 %v1424
          %vm1431 = vmor %vm1429, %vm1430
          %v1432 = vsel %vm1431, %v1424, %v1428
          %v1433 = vand.u32 2147483647, %v1423
          %vm1434 = vcmp.eq.f32.partialorder %v1433, 8.507059e+37
          %v1435 = vand.u32 %v1423, 2147483648
          %v1436 = vor.u32 1.1754944e-38, %v1435
          %v1437 = vsel %vm1434, %v1436, %v1432
          %v1438 = vmul.f32 1.0, %v1437
          %v1439 = vmul.f32 %v1418, %v1207
          %v1440 = vmul.f32 %v1399, %v1419
          %v1441 = vadd.f32 %v1439, %v1440
          %v1442 = vtanh.pop %v1441
          %v1443 = vmul.f32 %v1438, %v1442
          %s1444 = scalar_lea.vmem [#allocation20], 8
          %1445 = vst [vmem:[%s1444] sm:$0xff] %v1443
          %s1446 = scalar_lea.vmem [#allocation22], 8
          %1447 = vst [vmem:[%s1446] sm:$0xff] %v1441
          %1448 = vst [vmem:[#allocation3] sm:$0xff] %v1443
        $region92: #{one_step_decoder_forward.1} parent=59 // pred_fallthru
          _
        %v1449 = vld [vmem:[#allocation3] sm:$0xff]
        %v1450 = vld [vmem:[%s482] sm:$0xff]
        %v1451 = vld [vmem:[%s482 + $0x8] sm:$0xff]
        %v1452 = vld [vmem:[%s482 + $0x10] sm:$0xff]
        %v1453 = vld [vmem:[%s482 + $0x18] sm:$0xff]
        %v1454 = vld [vmem:[%s482 + $0x20] sm:$0xff]
        %v1455 = vld [vmem:[%s482 + $0x28] sm:$0xff]
        %v1456 = vld [vmem:[%s482 + $0x30] sm:$0xff]
        %v1457 = vld [vmem:[%s482 + $0x38] sm:$0xff]
        %v1458 = vld [vmem:[%s482 + $0x40] sm:$0xff]
        %v1459 = vld [vmem:[%s482 + $0x48] sm:$0xff]
        %v1460 = vld [vmem:[%s482 + $0x50] sm:$0xff]
        %v1461 = vld [vmem:[%s482 + $0x58] sm:$0xff]
        %v1462 = vld [vmem:[%s482 + $0x60] sm:$0xff]
        %v1463 = vld [vmem:[%s482 + $0x68] sm:$0xff]
        %v1464 = vld [vmem:[%s482 + $0x70] sm:$0xff]
        %v1465 = vld [vmem:[%s482 + $0x78] sm:$0xff]
        %v1466 = vld [vmem:[%s549] sm:$0x1]
        %v1468 = vperm.slane %v1466, 0
        %1470 = vmatpush.msra.mxu0 %v1465
        %1471 = vmatpush.msra.mxu0 %v1464
        %1472 = vmatpush.msra.mxu0 %v1463
        %1473 = vmatpush.msra.mxu0 %v1462
        %1474 = vmatpush.msra.mxu0 %v1461
        %1475 = vmatpush.msra.mxu0 %v1460
        %1476 = vmatpush.msra.mxu0 %v1459
        %1477 = vmatpush.msra.mxu0 %v1458
        %1478 = vmatpush.msra.mxu0 %v1457
        %1479 = vmatpush.msra.mxu0 %v1456
        %1480 = vmatpush.msra.mxu0 %v1455
        %1481 = vmatpush.msra.mxu0 %v1454
        %1482 = vmatpush.msra.mxu0 %v1453
        %1483 = vmatpush.msra.mxu0 %v1452
        %1484 = vmatpush.msra.mxu0 %v1451
        %1485 = vmatpush.msra.mxu0 %v1450
        %1486 = vmatmul.f32.gmra.mxu0 %v1449
        %v1487 = vpop.f32.mrf.mxu0
        %v1488 = vadd.f32 %v1468, %v1487
        %1489 = vdwg.mxu0
        %1490 = vst [vmem:[%s542] sm:$0xff] %v1488
        %s1491 = sand.u32 %s270, 1
        %s1492 = scalar_lea.sflag [#allocation9], %s1491
        %s1493 = sand.u32 %s270, 1
        %s1494 = smul.addr %s1493, 8
        %s1495 = scalar_lea.vmem [#allocation19], %s1494
        // Predicated region
        $region125: #{one_step_decoder_forward.1} parent=59 // pred_check
          %p1496 = pneg %p280
        $region126: #{one_step_decoder_forward.1} parent=59 // pred_check_branch
          %1498 = sbr.rel (%p1496) target = $region128
        $region127: #{one_step_decoder_forward.1} parent=59 // pred_region
          %1500 = vsyncadd %s1492, 0
          %s1501 = smul.addr %s42, 8
          %s1502 = scalar_lea.hbm %s12, %s1501
          %s1504 = sshll.u32 %s1495, 4
          %s1505 = int_to_ptr.vmem [resolvable:$true] %s1504
          %s1506 = sshll.u32 %s1502, 4
          %s1507 = int_to_ptr.hbm [resolvable:$true] %s1506
          %1509 = dma.vmem_to_hbm [thread:$0]  %s1505, 128, %s1507, %s1492
        $region128: #{one_step_decoder_forward.1} parent=59 // pred_fallthru
          _
        // Predicated region
        $region129: #{one_step_decoder_forward.1} parent=59 // pred_check
          %p1510 = pneg %p301
        $region130: #{one_step_decoder_forward.1} parent=59 // pred_check_branch
          %1512 = sbr.rel (%p1510) target = $region132
        $region131: #{one_step_decoder_forward.1} parent=59 // pred_region
          %1514 = vsyncadd [#allocation21], 0
          %s1515 = sshll.u32 [#allocation20], 4
          %s1516 = int_to_ptr.vmem [resolvable:$true] %s1515
          %s1517 = sshll.u32 %s13, 4
          %s1518 = int_to_ptr.hbm [resolvable:$true] %s1517
          %1523 = dma.vmem_to_hbm [thread:$0]  %s1516, 256, %s1518, [#allocation21], 128, 128, 8
        $region132: #{one_step_decoder_forward.1} parent=59 // pred_fallthru
          _
        // Predicated region
        $region133: #{one_step_decoder_forward.1} parent=59 // pred_check
          %p1524 = pneg %p322
        $region134: #{one_step_decoder_forward.1} parent=59 // pred_check_branch
          %1526 = sbr.rel (%p1524) target = $region136
        $region135: #{one_step_decoder_forward.1} parent=59 // pred_region
          %1528 = vsyncadd [#allocation21], 0
          %s1529 = sshll.u32 [#allocation22], 4
          %s1530 = int_to_ptr.vmem [resolvable:$true] %s1529
          %s1531 = sshll.u32 %s14, 4
          %s1532 = int_to_ptr.hbm [resolvable:$true] %s1531
          %1537 = dma.vmem_to_hbm [thread:$0]  %s1530, 256, %s1532, [#allocation21], 128, 128, 8
        $region136: #{one_step_decoder_forward.1} parent=59 // pred_fallthru
          _
        // Predicated region
        $region137: #{one_step_decoder_forward.1} parent=59 // pred_check
          %p1538 = pneg %p301
        $region138: #{one_step_decoder_forward.1} parent=59 // pred_check_branch
          %1540 = sbr.rel (%p1538) target = $region140
        $region139: #{one_step_decoder_forward.1} parent=59 // pred_region
          %1542 = dma.done [#allocation21], 256
        $region140: #{one_step_decoder_forward.1} parent=59 // pred_fallthru
          _
        // Predicated region
        $region141: #{one_step_decoder_forward.1} parent=59 // pred_check
          %p1543 = pneg %p322
        $region142: #{one_step_decoder_forward.1} parent=59 // pred_check_branch
          %1545 = sbr.rel (%p1543) target = $region144
        $region143: #{one_step_decoder_forward.1} parent=59 // pred_region
          %1547 = dma.done [#allocation21], 256
        $region144: #{one_step_decoder_forward.1} parent=59 // pred_fallthru
          _
      $region60: #{one_step_decoder_forward.1} parent=5 // pred_fallthru
        _
      %p1548 = scmp.le.s32.totalorder 2, %s37
      // Predicated region
      $region145: #{one_step_decoder_forward.1} parent=5 // pred_check
        %p1549 = pneg %p1548
      $region146: #{one_step_decoder_forward.1} parent=5 // pred_check_branch
        %1551 = sbr.rel (%p1549) target = $region148
      $region147: #{one_step_decoder_forward.1} parent=5 // pred_region
        %s1552 = ssub.s32 %s37, 2
        // Predicated region
        $region149: #{one_step_decoder_forward.1} parent=147 // pred_check
          %p1553 = pneg %p286
        $region150: #{one_step_decoder_forward.1} parent=147 // pred_check_branch
          %1555 = sbr.rel (%p1553) target = $region152
        $region151: #{one_step_decoder_forward.1} parent=147 // pred_region
          %s1556 = sand.u32 %s271, 1
          %s1557 = scalar_lea.sflag [#allocation9], %s1556
          %s1558 = sand.u32 %s271, 1
          %s1559 = smul.addr %s1558, 8
          %s1560 = scalar_lea.vmem [#allocation19], %s1559
          %1562 = dma.done %s1557, 128
        $region152: #{one_step_decoder_forward.1} parent=147 // pred_fallthru
          _
      $region148: #{one_step_decoder_forward.1} parent=5 // pred_fallthru
        _
    $region6: #{one_step_decoder_forward.1} parent=1 // loop_footer
      %s41 = sadd.s32 1, %s37
    $region7: #{one_step_decoder_forward.1} parent=1 // loop_footer_branch
      %36 = sbr.rel target = $region3
    $region8: #{one_step_decoder_forward.1} parent=1 // loop_exit
      _
    %1563 = vsyncpa [#allocation8], 1
    %s1564 = scalar_lea.sflag [#allocation8], 1
    %1565 = vsyncpa %s1564, 1
    %1566 = vsyncpa [#allocation11], 1
    %1567 = vsyncpa [#allocation15], 1
    %1568 = vsyncpa [#allocation18], 1
    %1569 = vsyncpa [#allocation9], 1
    %s1570 = scalar_lea.sflag [#allocation9], 1
    %1571 = vsyncpa %s1570, 1
    %1572 = vsyncpa [#allocation21], 1
  %1573 = vsyncmov [#allocation4]
  %s1574 = vpop.sfrf %1573
  %p1575 = scmp.eq.s32.totalorder %s1574, 0
  %p1576 = pneg %p1575
  %1578 = shalt.err (%p1576)
  %s1579 = scalar_lea.sflag [#allocation4], 1
  %1580 = vsyncmov %s1579
  %s1581 = vpop.sfrf %1580
  %p1582 = scmp.eq.s32.totalorder %s1581, 0
  %p1583 = pneg %p1582
  %1585 = shalt.err (%p1583)
  %s1586 = scalar_lea.sflag [#allocation4], 2
  %1587 = vsyncmov %s1586
  %s1588 = vpop.sfrf %1587
  %p1589 = scmp.eq.s32.totalorder %s1588, 0
  %p1590 = pneg %p1589
  %1592 = shalt.err (%p1590)
  %s1593 = scalar_lea.sflag [#allocation4], 3
  %1594 = vsyncmov %s1593
  %s1595 = vpop.sfrf %1594
  %p1596 = scmp.eq.s32.totalorder %s1595, 0
  %p1597 = pneg %p1596
  %1599 = shalt.err (%p1597)
  %s1600 = scalar_lea.sflag [#allocation4], 4
  %1601 = vsyncmov %s1600
  %s1602 = vpop.sfrf %1601
  %p1603 = scmp.eq.s32.totalorder %s1602, 0
  %p1604 = pneg %p1603
  %1606 = shalt.err (%p1604)
  %s1607 = scalar_lea.sflag [#allocation4], 5
  %1608 = vsyncmov %s1607
  %s1609 = vpop.sfrf %1608
  %p1610 = scmp.eq.s32.totalorder %s1609, 0
  %p1611 = pneg %p1610
  %1613 = shalt.err (%p1611)
  %s1614 = scalar_lea.sflag [#allocation4], 6
  %1615 = vsyncmov %s1614
  %s1616 = vpop.sfrf %1615
  %p1617 = scmp.eq.s32.totalorder %s1616, 0
  %p1618 = pneg %p1617
  %1620 = shalt.err (%p1618)
  %s1621 = scalar_lea.sflag [#allocation4], 7
  %1622 = vsyncmov %s1621
  %s1623 = vpop.sfrf %1622
  %p1624 = scmp.eq.s32.totalorder %s1623, 0
  %p1625 = pneg %p1624
  %1627 = shalt.err (%p1625)

</llo_original>
